<compile_context>
chip_gen: v5e
topology: v5e:2x2
jax: 0.10.0
libtpu: 0.0.40
codegen_flags: <defaults>
</compile_context>

<pallas_src>
import functools

import jax
import jax.numpy as jnp
from jax import lax
from jax.experimental import pallas as pl
from jax.experimental.pallas import tpu as pltpu


def _round_up(n, m):
    return -(-n // m) * m


def _pack(blocks, width):
    """Pack (name, 1-D/2-D array) blocks into one f32 slab.

    Every block starts on an 8-row (sublane) boundary and is right padded to
    `width` lanes, so a single DMA moves everything and the kernel reads each
    block back with cheap, aligned, static slices of the slab ref.  Offsets are
    Python ints (shapes are static) and are closed over by the kernel.
    """
    parts, offs, row = [], {}, 0
    for name, a in blocks:
        a = jnp.asarray(a, jnp.float32)
        if a.ndim == 1:
            a = a[None, :]
        nr, nc = a.shape
        nr_pad = _round_up(nr, 8)
        blk = jnp.zeros((nr_pad, width), jnp.float32).at[:nr, :nc].set(a)
        parts.append(blk)
        offs[name] = (row, nr, nc)
        row += nr_pad
    return jnp.concatenate(parts, axis=0), offs


# ----------------------------------------------------------------------------
# The single fused Pallas kernel
# ----------------------------------------------------------------------------

def _repas_fused_kernel(cfg, dofs, pofs, data_ref, par_ref, loss_ref):
    (N, H, K, Lout2, Lp2, pool1, pool2, BLK1, NLp1, F) = cfg
    f32 = jnp.float32

    def ld(ref, offs, name):
        r, nr, nc = offs[name]
        return ref[r:r + nr, 0:nc]

    # ---- load everything ONCE (two slab refs -> in-register values) ----------
    x1 = ld(data_ref, dofs, "x1")                    # (pool1*BLK1, K*emb)
    feats = ld(data_ref, dofs, "feats")              # (N, V_size)
    yv = ld(data_ref, dofs, "y")                     # (N, 1)

    w1 = ld(par_ref, pofs, "conv1_w")
    s1 = ld(par_ref, pofs, "bn1_s"); t1 = ld(par_ref, pofs, "bn1_t")
    w2 = ld(par_ref, pofs, "conv2_w")
    s2 = ld(par_ref, pofs, "bn2_s"); t2 = ld(par_ref, pofs, "bn2_t")
    wih = [ld(par_ref, pofs, "wih_" + g) for g in "ifog"]
    whh = [ld(par_ref, pofs, "whh_" + g) for g in "ifog"]
    lb = [ld(par_ref, pofs, "lb_" + g) for g in "ifog"]
    vw = ld(par_ref, pofs, "V_w"); vb = ld(par_ref, pofs, "V_b")
    wcomb = ld(par_ref, pofs, "wcomb"); bcomb = ld(par_ref, pofs, "bcomb")
    w1h = ld(par_ref, pofs, "w1h")
    w2m = ld(par_ref, pofs, "ref_w2"); b2m = ld(par_ref, pofs, "ref_b2")
    fw1 = ld(par_ref, pofs, "fin_w1"); fb1 = ld(par_ref, pofs, "fin_b1")
    fw2 = ld(par_ref, pofs, "fin_w2"); fb2 = ld(par_ref, pofs, "fin_b2")

    # ---- Seq_encoder, fully vectorised over all N key rows -------------------
    # conv1 (+BN+ReLU): one im2col matmul.  x1 rows are ordered
    # (pool1-phase j | pooled position m | key row n) by the glue, so MaxPool1
    # is an element-wise max of pool1 contiguous row blocks (no reshapes).
    y1 = jnp.dot(x1, w1, preferred_element_type=f32)
    y1 = jnp.maximum(y1 * s1 + t1, 0.0)

    p1 = y1[0:NLp1, :]
    for j in range(1, pool1):
        p1 = jnp.maximum(p1, y1[j * BLK1:j * BLK1 + NLp1, :])    # (Lp1*N, C)

    # conv2 (+BN+ReLU): the K taps are contiguous row-shifted views of p1;
    # lane-concatenate them -> ONE im2col matmul for all rows and taps.
    taps = jnp.concatenate(
        [p1[k * N:(k + Lout2) * N, :] for k in range(K)], axis=-1)  # (Lout2*N, K*C)
    y2 = jnp.dot(taps, w2, preferred_element_type=f32)
    y2 = jnp.maximum(y2 * s2 + t2, 0.0)                             # (Lout2*N, C)

    # MaxPool1d #2 (floor) + flatten into the LSTM input rows.
    xs_blocks = []
    for m in range(Lp2):
        blk = y2[m * pool2 * N:(m * pool2 + 1) * N, :]
        for j in range(1, pool2):
            blk = jnp.maximum(
                blk, y2[(m * pool2 + j) * N:(m * pool2 + j + 1) * N, :])
        xs_blocks.append(blk)
    xs = xs_blocks[0] if Lp2 == 1 else jnp.concatenate(xs_blocks, axis=-1)
    # NOTE: (l, c)-major flatten; identical to PyTorch's channel-major flatten
    # when Lp2 == 1 (the case here).  lstm_wih rows were generated in this
    # layout at init, so the semantics/distribution are unchanged.

    # ---- LSTM over the N key rows (fully unrolled), gates pre-split ----------
    gx = [jnp.dot(xs, wih[g], preferred_element_type=f32) + lb[g]
          for g in range(4)]                                     # 4 x (N, H)
    h = jnp.zeros((1, H), f32)
    c = jnp.zeros((1, H), f32)
    hks = []
    for t in range(N):
        gi = jax.nn.sigmoid(gx[0][t:t + 1, :]
                            + jnp.dot(h, whh[0], preferred_element_type=f32))
        gf = jax.nn.sigmoid(gx[1][t:t + 1, :]
                            + jnp.dot(h, whh[1], preferred_element_type=f32))
        go = jax.nn.sigmoid(gx[2][t:t + 1, :]
                            + jnp.dot(h, whh[2], preferred_element_type=f32))
        gg = jnp.tanh(gx[3][t:t + 1, :]
                      + jnp.dot(h, whh[3], preferred_element_type=f32))
        c = gf * c + gi * gg
        h = go * jnp.tanh(c)
        hks.append(jnp.maximum(h, 0.0))        # F.relu on the LSTM outputs
    HK = jnp.concatenate(hks, axis=0)          # (N, H)

    # H_K is identical at every timestep (causal LSTM, row-independent encoder)
    # -> hoist its half of the refinement Linear out of the loop.
    hkproj = jnp.dot(HK, w1h, preferred_element_type=f32)

    # ---- V_linear -------------------------------------------------------------
    Vb = jnp.dot(feats, vw, preferred_element_type=f32) + vb     # (N, H)

    # Hoist constant broadcasts out of the unrolled refinement loop.
    bcomb_b = jnp.broadcast_to(bcomb, (N, 2 * H))
    b2m_b = jnp.broadcast_to(b2m, (N, H))
    fb1_b = jnp.broadcast_to(fb1, (N, F))
    fb2_b = jnp.broadcast_to(fb2, (N, 1))
    row_ids = lax.broadcasted_iota(jnp.int32, (N, 1), 0)

    loss = jnp.zeros((1, 1), f32)
    # Autoregressive refinement with fixed shapes + row masks.  Rows <= t carry
    # their refined value forward across timesteps (exactly the PyTorch carry of
    # V between iterations); rows > t still hold their V_linear(V_true) value.
    for t in range(N):
        mask = (row_ids <= t).astype(f32)                        # (N, 1)
        inv_cnt = 1.0 / (t + 1)
        # merged matmul: [attention 1x1 conv | V-block of refine Linear #1]
        z = jnp.dot(Vb, wcomb, preferred_element_type=f32) + bcomb_b
        vmask = jax.nn.sigmoid(z[:, :H])                 # attention_module
        h1 = jnp.maximum(z[:, H:] + hkproj, 0.0)         # Linear(2H->H) + ReLU
        msg = jnp.dot(h1, w2m, preferred_element_type=f32) + b2m_b
        mes_mean = jnp.sum(msg * vmask * mask, axis=0, keepdims=True) * inv_cnt
        hv = Vb + mes_mean                    # Dropout == identity (eval mode)
        # TODO(synk): `Normalize` is undefined in the reference; implemented as
        # a parameter-free LayerNorm over the hidden dimension.
        mu = jnp.mean(hv, axis=-1, keepdims=True)
        var = jnp.mean((hv - mu) * (hv - mu), axis=-1, keepdims=True)
        vn = (hv - mu) * lax.rsqrt(var + 1e-5)
        Vb = mask * vn + (1.0 - mask) * Vb    # rows > t keep their V_true value

        # final_linear + MAE over the active rows (mae_loss assumed = mean |.|).
        h2 = jnp.maximum(
            jnp.dot(Vb, fw1, preferred_element_type=f32) + fb1_b, 0.0)
        xpred = jax.nn.sigmoid(
            jnp.dot(h2, fw2, preferred_element_type=f32) + fb2_b)    # (N, 1)
        loss = loss + jnp.sum(jnp.abs(yv - xpred) * mask,
                              axis=0, keepdims=True) * inv_cnt

    # TODO(synk): dev_loss is undefined in the reference; treated as 0.
    loss_ref[...] = loss          # single store, outside the loop


# ----------------------------------------------------------------------------
# Glue: embedding gather + conv1 im2col + slab packing, then ONE pallas_call
# ----------------------------------------------------------------------------

def pack_params(p, H, C, F):
    width = max(2 * H, C, F)
    blocks = [
        ("conv1_w", p["conv1_w"]), ("bn1_s", p["bn1_s"]), ("bn1_t", p["bn1_t"]),
        ("conv2_w", p["conv2_w"]), ("bn2_s", p["bn2_s"]), ("bn2_t", p["bn2_t"]),
    ]
    for g in "ifog":
        blocks.append(("wih_" + g, p["wih_" + g]))
    for g in "ifog":
        blocks.append(("whh_" + g, p["whh_" + g]))
    for g in "ifog":
        blocks.append(("lb_" + g, p["lb_" + g]))
    blocks += [
        ("V_w", p["V_w"]), ("V_b", p["V_b"]),
        ("wcomb", jnp.concatenate([p["att_w"], p["ref_w1v"]], axis=1)),
        ("bcomb", jnp.concatenate([p["att_b"], p["ref_b1"]])),
        ("w1h", p["ref_w1h"]),
        ("ref_w2", p["ref_w2"]), ("ref_b2", p["ref_b2"]),
        ("fin_w1", p["fin_w1"]), ("fin_b1", p["fin_b1"]),
        ("fin_w2", p["fin_w2"]), ("fin_b2", p["fin_b2"]),
    ]
    return _pack(blocks, width)


def make_forward(pofs, *, N, max_len, emb, H, C, K, pool1, pool2, Vsz, F, lamda):
    Lout1 = max_len - K + 1
    Lp1 = Lout1 // pool1
    Lout2 = Lp1 - K + 1
    Lp2 = Lout2 // pool2
    NLp1 = Lp1 * N
    BLK1 = _round_up(NLp1, 8)
    cfg = (N, H, K, Lout2, Lp2, pool1, pool2, BLK1, NLp1, F)
    dw = max(K * emb, Vsz)

    def forward(param_slab, embed, x, y):
        tokens = x[:, :max_len].astype(jnp.int32)
        feats = x[:, max_len:]
        # Embedding gather (padding_idx=0 row is zero) and the conv1 im2col slab
        # are the only pieces outside the fused kernel (one-time XLA ops).
        E = embed[tokens]                                        # (N, L, emb)
        cols = jnp.concatenate([E[:, k:k + Lout1, :] for k in range(K)],
                               axis=-1)                          # (N, Lout1, K*emb)
        # Order rows (pool1-phase j | pooled position m | key row n), 8-aligned
        # per phase block, so the kernel pools with contiguous block maxes.
        blocks = []
        for j in range(pool1):
            blk = cols[:, j:j + Lp1 * pool1:pool1, :]            # (N, Lp1, K*emb)
            blk = jnp.transpose(blk, (1, 0, 2)).reshape(NLp1, K * emb)
            blk = jnp.pad(blk, ((0, BLK1 - NLp1), (0, 0)))
            blocks.append(blk)
        x1 = jnp.concatenate(blocks, axis=0)                     # (pool1*BLK1, K*emb)

        data_slab, dofs = _pack(
            [("x1", x1), ("feats", feats), ("y", y.reshape(N, 1))], dw)

        kernel = functools.partial(_repas_fused_kernel, cfg, dofs, pofs)
        loss2d = pl.pallas_call(
            kernel,
            grid=(1,),
            out_shape=jax.ShapeDtypeStruct((1, 1), jnp.float32),
            in_specs=[
                pl.BlockSpec(data_slab.shape, lambda i: (0, 0)),
                pl.BlockSpec(param_slab.shape, lambda i: (0, 0)),
            ],
            out_specs=pl.BlockSpec((1, 1), lambda i: (0, 0)),
            compiler_params=pltpu.CompilerParams(
                dimension_semantics=("arbitrary",)),
        )(data_slab, param_slab)
        # TODO(synk): dev_loss undefined in the reference; lamda unused (term=0).
        return loss2d[0, 0]

    return jax.jit(forward)


# ----------------------------------------------------------------------------
# Deterministic parameter construction
# ----------------------------------------------------------------------------

def kaiming_uniform(key, shape, fan_in):
    bound = (6.0 / fan_in) ** 0.5
    return jax.random.uniform(key, shape, jnp.float32, -bound, bound)


def make_params(key, vocab, emb, conv, kconv, hidden, vsize, final, after):
    keys = iter(jax.random.split(key, 40))
    nk = lambda: next(keys)
    bn_scale = 1.0 / jnp.sqrt(1.0 + 1e-5)   # eval BN: mean=0, var=1, eps=1e-5
    p = {}
    embed = kaiming_uniform(nk(), (vocab, emb), emb)
    p["embed"] = embed.at[0].set(0.0)                       # padding_idx = 0
    # Conv1d #1 pre-flattened for im2col: rows ordered (tap k, in-channel).
    p["conv1_w"] = kaiming_uniform(nk(), (kconv * emb, conv), emb * kconv)
    b1 = 0.01 * jax.random.normal(nk(), (conv,), jnp.float32)
    p["bn1_s"] = jnp.full((conv,), bn_scale, jnp.float32)
    p["bn1_t"] = b1 * bn_scale
    # Conv1d #2 pre-flattened the same way: rows ordered (tap k, in-channel).
    p["conv2_w"] = kaiming_uniform(nk(), (kconv * conv, conv), conv * kconv)
    b2 = 0.01 * jax.random.normal(nk(), (conv,), jnp.float32)
    p["bn2_s"] = jnp.full((conv,), bn_scale, jnp.float32)
    p["bn2_t"] = b2 * bn_scale
    D = conv * after
    # LSTM weights generated per-gate (kernel never slices packed gate rows)
    # with input rows in the (l, c)-major flatten order the kernel produces
    # (random init, so the reordering does not change the semantics).
    for g in "ifog":
        p["wih_" + g] = kaiming_uniform(nk(), (D, hidden), D)
        p["whh_" + g] = kaiming_uniform(nk(), (hidden, hidden), hidden)
        p["lb_" + g] = 0.01 * jax.random.normal(nk(), (hidden,), jnp.float32)
    p["att_w"] = kaiming_uniform(nk(), (hidden, hidden), hidden)
    p["att_b"] = 0.01 * jax.random.normal(nk(), (hidden,), jnp.float32)
    p["ref_w1v"] = kaiming_uniform(nk(), (hidden, hidden), 2 * hidden)
    p["ref_w1h"] = kaiming_uniform(nk(), (hidden, hidden), 2 * hidden)
    p["ref_b1"] = 0.01 * jax.random.normal(nk(), (hidden,), jnp.float32)
    p["ref_w2"] = kaiming_uniform(nk(), (hidden, hidden), hidden)
    p["ref_b2"] = 0.01 * jax.random.normal(nk(), (hidden,), jnp.float32)
    p["V_w"] = kaiming_uniform(nk(), (vsize, hidden), vsize)
    p["V_b"] = 0.01 * jax.random.normal(nk(), (hidden,), jnp.float32)
    p["fin_w1"] = kaiming_uniform(nk(), (hidden, final), hidden)
    p["fin_b1"] = 0.01 * jax.random.normal(nk(), (final,), jnp.float32)
    p["fin_w2"] = kaiming_uniform(nk(), (final, 1), final)
    p["fin_b2"] = 0.01 * jax.random.normal(nk(), (1,), jnp.float32)
    return p


# ----------------------------------------------------------------------------
# Main
# ----------------------------------------------------------------------------

if __name__ == "__main__":
    # hyper-parameters (small, consistent with the module's constructor)
    vocab_size = 20
    max_len = 12
    embedding_size = 8
    conv_size = 8
    kernel_conv_size = 3
    kernel_max1_size = 2
    kernel_max2_size = 2
    hidden_size = 16
    final_linear_size = 8
    V_size = 6
    lamda = 0.1
    N = 4  # number of rows in data.x

    after_seq_size = (((max_len - kernel_conv_size + 1) // kernel_max1_size
                       - kernel_conv_size + 1) // kernel_max2_size)

    key = jax.random.PRNGKey(0)
    kp, kt, kv, ky = jax.random.split(key, 4)

    params = make_params(kp, vocab_size, embedding_size, conv_size,
                         kernel_conv_size, hidden_size, V_size,
                         final_linear_size, after_seq_size)
    param_slab, pofs = pack_params(params, hidden_size, conv_size,
                                   final_linear_size)

    tokens = jax.random.randint(kt, (N, max_len), 0, vocab_size)
    feats = jax.random.normal(kv, (N, V_size), jnp.float32)
    x = jnp.concatenate([tokens.astype(jnp.float32), feats], axis=-1)  # (N, 18)
    y = jax.random.uniform(ky, (N,), jnp.float32)

    forward = make_forward(pofs, N=N, max_len=max_len, emb=embedding_size,
                           H=hidden_size, C=conv_size, K=kernel_conv_size,
                           pool1=kernel_max1_size, pool2=kernel_max2_size,
                           Vsz=V_size, F=final_linear_size, lamda=lamda)

    loss = forward(param_slab, params["embed"], x, y)
    loss = jax.block_until_ready(loss)
    assert jnp.isfinite(loss)
    print("KERNEL_OK")
</pallas_src>

<mosaic_0001>
module attributes {stable_mosaic.version = 11 : i64} {
  func.func @_repas_fused_kernel(%arg0: i32, %arg1: memref<64x24xf32, #tpu.memory_space<vmem>>, %arg2: memref<328x32xf32, #tpu.memory_space<vmem>>, %arg3: memref<1x1xf32, #tpu.memory_space<vmem>>) attributes {dimension_semantics = [#tpu.dimension_semantics<arbitrary>], iteration_bounds = array<i64: 1>, scalar_prefetch = 0 : i64, scratch_operands = 0 : i64, tpu.core_type = #tpu.core_type<tc>, window_params = [{pipeline_mode = #tpu.pipeline_mode<synchronous>, transform_indices = @transform_0, window_bounds = array<i64: 64, 24>}, {pipeline_mode = #tpu.pipeline_mode<synchronous>, transform_indices = @transform_1, window_bounds = array<i64: 328, 32>}, {pipeline_mode = #tpu.pipeline_mode<synchronous>, transform_indices = @transform_2, window_bounds = array<i64: 1, 1>}]} {
    %c0 = arith.constant 0 : index
    %c0_0 = arith.constant 0 : index
    %0 = vector.load %arg1[%c0, %c0_0] : memref<64x24xf32, #tpu.memory_space<vmem>>, vector<48x24xf32>
    %c48 = arith.constant 48 : index
    %c0_1 = arith.constant 0 : index
    %1 = vector.load %arg1[%c48, %c0_1] : memref<64x24xf32, #tpu.memory_space<vmem>>, vector<4x6xf32>
    %c56 = arith.constant 56 : index
    %c0_2 = arith.constant 0 : index
    %2 = vector.load %arg1[%c56, %c0_2] : memref<64x24xf32, #tpu.memory_space<vmem>>, vector<4x1xf32>
    %c0_3 = arith.constant 0 : index
    %c0_4 = arith.constant 0 : index
    %3 = vector.load %arg2[%c0_3, %c0_4] : memref<328x32xf32, #tpu.memory_space<vmem>>, vector<24x8xf32>
    %c24 = arith.constant 24 : index
    %c0_5 = arith.constant 0 : index
    %4 = vector.load %arg2[%c24, %c0_5] : memref<328x32xf32, #tpu.memory_space<vmem>>, vector<1x8xf32>
    %c32 = arith.constant 32 : index
    %c0_6 = arith.constant 0 : index
    %5 = vector.load %arg2[%c32, %c0_6] : memref<328x32xf32, #tpu.memory_space<vmem>>, vector<1x8xf32>
    %c40 = arith.constant 40 : index
    %c0_7 = arith.constant 0 : index
    %6 = vector.load %arg2[%c40, %c0_7] : memref<328x32xf32, #tpu.memory_space<vmem>>, vector<24x8xf32>
    %c64 = arith.constant 64 : index
    %c0_8 = arith.constant 0 : index
    %7 = vector.load %arg2[%c64, %c0_8] : memref<328x32xf32, #tpu.memory_space<vmem>>, vector<1x8xf32>
    %c72 = arith.constant 72 : index
    %c0_9 = arith.constant 0 : index
    %8 = vector.load %arg2[%c72, %c0_9] : memref<328x32xf32, #tpu.memory_space<vmem>>, vector<1x8xf32>
    %c80 = arith.constant 80 : index
    %c0_10 = arith.constant 0 : index
    %9 = vector.load %arg2[%c80, %c0_10] : memref<328x32xf32, #tpu.memory_space<vmem>>, vector<8x16xf32>
    %c88 = arith.constant 88 : index
    %c0_11 = arith.constant 0 : index
    %10 = vector.load %arg2[%c88, %c0_11] : memref<328x32xf32, #tpu.memory_space<vmem>>, vector<8x16xf32>
    %c96 = arith.constant 96 : index
    %c0_12 = arith.constant 0 : index
    %11 = vector.load %arg2[%c96, %c0_12] : memref<328x32xf32, #tpu.memory_space<vmem>>, vector<8x16xf32>
    %c104 = arith.constant 104 : index
    %c0_13 = arith.constant 0 : index
    %12 = vector.load %arg2[%c104, %c0_13] : memref<328x32xf32, #tpu.memory_space<vmem>>, vector<8x16xf32>
    %c112 = arith.constant 112 : index
    %c0_14 = arith.constant 0 : index
    %13 = vector.load %arg2[%c112, %c0_14] : memref<328x32xf32, #tpu.memory_space<vmem>>, vector<16x16xf32>
    %c128 = arith.constant 128 : index
    %c0_15 = arith.constant 0 : index
    %14 = vector.load %arg2[%c128, %c0_15] : memref<328x32xf32, #tpu.memory_space<vmem>>, vector<16x16xf32>
    %c144 = arith.constant 144 : index
    %c0_16 = arith.constant 0 : index
    %15 = vector.load %arg2[%c144, %c0_16] : memref<328x32xf32, #tpu.memory_space<vmem>>, vector<16x16xf32>
    %c160 = arith.constant 160 : index
    %c0_17 = arith.constant 0 : index
    %16 = vector.load %arg2[%c160, %c0_17] : memref<328x32xf32, #tpu.memory_space<vmem>>, vector<16x16xf32>
    %c176 = arith.constant 176 : index
    %c0_18 = arith.constant 0 : index
    %17 = vector.load %arg2[%c176, %c0_18] : memref<328x32xf32, #tpu.memory_space<vmem>>, vector<1x16xf32>
    %c184 = arith.constant 184 : index
    %c0_19 = arith.constant 0 : index
    %18 = vector.load %arg2[%c184, %c0_19] : memref<328x32xf32, #tpu.memory_space<vmem>>, vector<1x16xf32>
    %c192 = arith.constant 192 : index
    %c0_20 = arith.constant 0 : index
    %19 = vector.load %arg2[%c192, %c0_20] : memref<328x32xf32, #tpu.memory_space<vmem>>, vector<1x16xf32>
    %c200 = arith.constant 200 : index
    %c0_21 = arith.constant 0 : index
    %20 = vector.load %arg2[%c200, %c0_21] : memref<328x32xf32, #tpu.memory_space<vmem>>, vector<1x16xf32>
    %c208 = arith.constant 208 : index
    %c0_22 = arith.constant 0 : index
    %21 = vector.load %arg2[%c208, %c0_22] : memref<328x32xf32, #tpu.memory_space<vmem>>, vector<6x16xf32>
    %c216 = arith.constant 216 : index
    %c0_23 = arith.constant 0 : index
    %22 = vector.load %arg2[%c216, %c0_23] : memref<328x32xf32, #tpu.memory_space<vmem>>, vector<1x16xf32>
    %c224 = arith.constant 224 : index
    %c0_24 = arith.constant 0 : index
    %23 = vector.load %arg2[%c224, %c0_24] : memref<328x32xf32, #tpu.memory_space<vmem>>, vector<16x32xf32>
    %c240 = arith.constant 240 : index
    %c0_25 = arith.constant 0 : index
    %24 = vector.load %arg2[%c240, %c0_25] : memref<328x32xf32, #tpu.memory_space<vmem>>, vector<1x32xf32>
    %c248 = arith.constant 248 : index
    %c0_26 = arith.constant 0 : index
    %25 = vector.load %arg2[%c248, %c0_26] : memref<328x32xf32, #tpu.memory_space<vmem>>, vector<16x16xf32>
    %c264 = arith.constant 264 : index
    %c0_27 = arith.constant 0 : index
    %26 = vector.load %arg2[%c264, %c0_27] : memref<328x32xf32, #tpu.memory_space<vmem>>, vector<16x16xf32>
    %c280 = arith.constant 280 : index
    %c0_28 = arith.constant 0 : index
    %27 = vector.load %arg2[%c280, %c0_28] : memref<328x32xf32, #tpu.memory_space<vmem>>, vector<1x16xf32>
    %c288 = arith.constant 288 : index
    %c0_29 = arith.constant 0 : index
    %28 = vector.load %arg2[%c288, %c0_29] : memref<328x32xf32, #tpu.memory_space<vmem>>, vector<16x8xf32>
    %c304 = arith.constant 304 : index
    %c0_30 = arith.constant 0 : index
    %29 = vector.load %arg2[%c304, %c0_30] : memref<328x32xf32, #tpu.memory_space<vmem>>, vector<1x8xf32>
    %c312 = arith.constant 312 : index
    %c0_31 = arith.constant 0 : index
    %30 = vector.load %arg2[%c312, %c0_31] : memref<328x32xf32, #tpu.memory_space<vmem>>, vector<8x1xf32>
    %c320 = arith.constant 320 : index
    %c0_32 = arith.constant 0 : index
    %31 = vector.load %arg2[%c320, %c0_32] : memref<328x32xf32, #tpu.memory_space<vmem>>, vector<1x1xf32>
    %cst = arith.constant dense<0.000000e+00> : vector<48x8xf32>
    %32 = tpu.matmul %0, %3, %cst {dimension_numbers = #tpu.dot_dimension_numbers<[1], [0], [0], [1], [0, 0, 1, 1], [], []>} : vector<48x24xf32>, vector<24x8xf32>, vector<48x8xf32> -> vector<48x8xf32>
    %33 = vector.broadcast %4 : vector<1x8xf32> to vector<48x8xf32>
    %34 = arith.mulf %32, %33 : vector<48x8xf32>
    %35 = vector.broadcast %5 : vector<1x8xf32> to vector<48x8xf32>
    %36 = arith.addf %34, %35 : vector<48x8xf32>
    %cst_33 = arith.constant 0.000000e+00 : f32
    %37 = vector.broadcast %cst_33 : f32 to vector<48x8xf32>
    %38 = arith.maximumf %36, %37 : vector<48x8xf32>
    %39 = vector.extract_strided_slice %38 {offsets = [0, 0], sizes = [20, 8], strides = [1, 1]} : vector<48x8xf32> to vector<20x8xf32>
    %40 = vector.extract_strided_slice %38 {offsets = [24, 0], sizes = [20, 8], strides = [1, 1]} : vector<48x8xf32> to vector<20x8xf32>
    %41 = arith.maximumf %39, %40 : vector<20x8xf32>
    %42 = vector.extract_strided_slice %41 {offsets = [0, 0], sizes = [12, 8], strides = [1, 1]} : vector<20x8xf32> to vector<12x8xf32>
    %43 = vector.extract_strided_slice %41 {offsets = [4, 0], sizes = [12, 8], strides = [1, 1]} : vector<20x8xf32> to vector<12x8xf32>
    %44 = vector.extract_strided_slice %41 {offsets = [8, 0], sizes = [12, 8], strides = [1, 1]} : vector<20x8xf32> to vector<12x8xf32>
    %45 = tpu.concatenate %42, %43, %44 in 1 : vector<12x8xf32>, vector<12x8xf32>, vector<12x8xf32> -> vector<12x24xf32>
    %cst_34 = arith.constant dense<0.000000e+00> : vector<12x8xf32>
    %46 = tpu.matmul %45, %6, %cst_34 {dimension_numbers = #tpu.dot_dimension_numbers<[1], [0], [0], [1], [0, 0, 1, 1], [], []>} : vector<12x24xf32>, vector<24x8xf32>, vector<12x8xf32> -> vector<12x8xf32>
    %47 = vector.broadcast %7 : vector<1x8xf32> to vector<12x8xf32>
    %48 = arith.mulf %46, %47 : vector<12x8xf32>
    %49 = vector.broadcast %8 : vector<1x8xf32> to vector<12x8xf32>
    %50 = arith.addf %48, %49 : vector<12x8xf32>
    %cst_35 = arith.constant 0.000000e+00 : f32
    %51 = vector.broadcast %cst_35 : f32 to vector<12x8xf32>
    %52 = arith.maximumf %50, %51 : vector<12x8xf32>
    %53 = vector.extract_strided_slice %52 {offsets = [0, 0], sizes = [4, 8], strides = [1, 1]} : vector<12x8xf32> to vector<4x8xf32>
    %54 = vector.extract_strided_slice %52 {offsets = [4, 0], sizes = [4, 8], strides = [1, 1]} : vector<12x8xf32> to vector<4x8xf32>
    %55 = arith.maximumf %53, %54 : vector<4x8xf32>
    %cst_36 = arith.constant dense<0.000000e+00> : vector<4x16xf32>
    %56 = tpu.matmul %55, %9, %cst_36 {dimension_numbers = #tpu.dot_dimension_numbers<[1], [0], [0], [1], [0, 0, 1, 1], [], []>} : vector<4x8xf32>, vector<8x16xf32>, vector<4x16xf32> -> vector<4x16xf32>
    %57 = vector.broadcast %17 : vector<1x16xf32> to vector<4x16xf32>
    %58 = arith.addf %56, %57 : vector<4x16xf32>
    %cst_37 = arith.constant dense<0.000000e+00> : vector<4x16xf32>
    %59 = tpu.matmul %55, %10, %cst_37 {dimension_numbers = #tpu.dot_dimension_numbers<[1], [0], [0], [1], [0, 0, 1, 1], [], []>} : vector<4x8xf32>, vector<8x16xf32>, vector<4x16xf32> -> vector<4x16xf32>
    %60 = vector.broadcast %18 : vector<1x16xf32> to vector<4x16xf32>
    %61 = arith.addf %59, %60 : vector<4x16xf32>
    %cst_38 = arith.constant dense<0.000000e+00> : vector<4x16xf32>
    %62 = tpu.matmul %55, %11, %cst_38 {dimension_numbers = #tpu.dot_dimension_numbers<[1], [0], [0], [1], [0, 0, 1, 1], [], []>} : vector<4x8xf32>, vector<8x16xf32>, vector<4x16xf32> -> vector<4x16xf32>
    %63 = vector.broadcast %19 : vector<1x16xf32> to vector<4x16xf32>
    %64 = arith.addf %62, %63 : vector<4x16xf32>
    %cst_39 = arith.constant dense<0.000000e+00> : vector<4x16xf32>
    %65 = tpu.matmul %55, %12, %cst_39 {dimension_numbers = #tpu.dot_dimension_numbers<[1], [0], [0], [1], [0, 0, 1, 1], [], []>} : vector<4x8xf32>, vector<8x16xf32>, vector<4x16xf32> -> vector<4x16xf32>
    %66 = vector.broadcast %20 : vector<1x16xf32> to vector<4x16xf32>
    %67 = arith.addf %65, %66 : vector<4x16xf32>
    %cst_40 = arith.constant 0.000000e+00 : f32
    %68 = vector.broadcast %cst_40 : f32 to vector<1x16xf32>
    %cst_41 = arith.constant 0.000000e+00 : f32
    %69 = vector.broadcast %cst_41 : f32 to vector<1x16xf32>
    %70 = vector.extract_strided_slice %58 {offsets = [0, 0], sizes = [1, 16], strides = [1, 1]} : vector<4x16xf32> to vector<1x16xf32>
    %cst_42 = arith.constant dense<0.000000e+00> : vector<1x16xf32>
    %71 = tpu.matmul %68, %13, %cst_42 {dimension_numbers = #tpu.dot_dimension_numbers<[1], [0], [0], [1], [0, 0, 1, 1], [], []>} : vector<1x16xf32>, vector<16x16xf32>, vector<1x16xf32> -> vector<1x16xf32>
    %72 = arith.addf %70, %71 : vector<1x16xf32>
    %73 = arith.negf %72 : vector<1x16xf32>
    %74 = math.exp %73 : vector<1x16xf32>
    %cst_43 = arith.constant 1.000000e+00 : f32
    %75 = vector.broadcast %cst_43 : f32 to vector<1x16xf32>
    %76 = arith.addf %75, %74 : vector<1x16xf32>
    %77 = arith.divf %75, %76 : vector<1x16xf32>
    %78 = vector.extract_strided_slice %61 {offsets = [0, 0], sizes = [1, 16], strides = [1, 1]} : vector<4x16xf32> to vector<1x16xf32>
    %cst_44 = arith.constant dense<0.000000e+00> : vector<1x16xf32>
    %79 = tpu.matmul %68, %14, %cst_44 {dimension_numbers = #tpu.dot_dimension_numbers<[1], [0], [0], [1], [0, 0, 1, 1], [], []>} : vector<1x16xf32>, vector<16x16xf32>, vector<1x16xf32> -> vector<1x16xf32>
    %80 = arith.addf %78, %79 : vector<1x16xf32>
    %81 = arith.negf %80 : vector<1x16xf32>
    %82 = math.exp %81 : vector<1x16xf32>
    %cst_45 = arith.constant 1.000000e+00 : f32
    %83 = vector.broadcast %cst_45 : f32 to vector<1x16xf32>
    %84 = arith.addf %83, %82 : vector<1x16xf32>
    %85 = arith.divf %83, %84 : vector<1x16xf32>
    %86 = vector.extract_strided_slice %64 {offsets = [0, 0], sizes = [1, 16], strides = [1, 1]} : vector<4x16xf32> to vector<1x16xf32>
    %cst_46 = arith.constant dense<0.000000e+00> : vector<1x16xf32>
    %87 = tpu.matmul %68, %15, %cst_46 {dimension_numbers = #tpu.dot_dimension_numbers<[1], [0], [0], [1], [0, 0, 1, 1], [], []>} : vector<1x16xf32>, vector<16x16xf32>, vector<1x16xf32> -> vector<1x16xf32>
    %88 = arith.addf %86, %87 : vector<1x16xf32>
    %89 = arith.negf %88 : vector<1x16xf32>
    %90 = math.exp %89 : vector<1x16xf32>
    %cst_47 = arith.constant 1.000000e+00 : f32
    %91 = vector.broadcast %cst_47 : f32 to vector<1x16xf32>
    %92 = arith.addf %91, %90 : vector<1x16xf32>
    %93 = arith.divf %91, %92 : vector<1x16xf32>
    %94 = vector.extract_strided_slice %67 {offsets = [0, 0], sizes = [1, 16], strides = [1, 1]} : vector<4x16xf32> to vector<1x16xf32>
    %cst_48 = arith.constant dense<0.000000e+00> : vector<1x16xf32>
    %95 = tpu.matmul %68, %16, %cst_48 {dimension_numbers = #tpu.dot_dimension_numbers<[1], [0], [0], [1], [0, 0, 1, 1], [], []>} : vector<1x16xf32>, vector<16x16xf32>, vector<1x16xf32> -> vector<1x16xf32>
    %96 = arith.addf %94, %95 : vector<1x16xf32>
    %97 = math.tanh %96 : vector<1x16xf32>
    %98 = arith.mulf %85, %69 : vector<1x16xf32>
    %99 = arith.mulf %77, %97 : vector<1x16xf32>
    %100 = arith.addf %98, %99 : vector<1x16xf32>
    %101 = math.tanh %100 : vector<1x16xf32>
    %102 = arith.mulf %93, %101 : vector<1x16xf32>
    %cst_49 = arith.constant 0.000000e+00 : f32
    %103 = vector.broadcast %cst_49 : f32 to vector<1x16xf32>
    %104 = arith.maximumf %102, %103 : vector<1x16xf32>
    %105 = vector.extract_strided_slice %58 {offsets = [1, 0], sizes = [1, 16], strides = [1, 1]} : vector<4x16xf32> to vector<1x16xf32>
    %cst_50 = arith.constant dense<0.000000e+00> : vector<1x16xf32>
    %106 = tpu.matmul %102, %13, %cst_50 {dimension_numbers = #tpu.dot_dimension_numbers<[1], [0], [0], [1], [0, 0, 1, 1], [], []>} : vector<1x16xf32>, vector<16x16xf32>, vector<1x16xf32> -> vector<1x16xf32>
    %107 = arith.addf %105, %106 : vector<1x16xf32>
    %108 = arith.negf %107 : vector<1x16xf32>
    %109 = math.exp %108 : vector<1x16xf32>
    %cst_51 = arith.constant 1.000000e+00 : f32
    %110 = vector.broadcast %cst_51 : f32 to vector<1x16xf32>
    %111 = arith.addf %110, %109 : vector<1x16xf32>
    %112 = arith.divf %110, %111 : vector<1x16xf32>
    %113 = vector.extract_strided_slice %61 {offsets = [1, 0], sizes = [1, 16], strides = [1, 1]} : vector<4x16xf32> to vector<1x16xf32>
    %cst_52 = arith.constant dense<0.000000e+00> : vector<1x16xf32>
    %114 = tpu.matmul %102, %14, %cst_52 {dimension_numbers = #tpu.dot_dimension_numbers<[1], [0], [0], [1], [0, 0, 1, 1], [], []>} : vector<1x16xf32>, vector<16x16xf32>, vector<1x16xf32> -> vector<1x16xf32>
    %115 = arith.addf %113, %114 : vector<1x16xf32>
    %116 = arith.negf %115 : vector<1x16xf32>
    %117 = math.exp %116 : vector<1x16xf32>
    %cst_53 = arith.constant 1.000000e+00 : f32
    %118 = vector.broadcast %cst_53 : f32 to vector<1x16xf32>
    %119 = arith.addf %118, %117 : vector<1x16xf32>
    %120 = arith.divf %118, %119 : vector<1x16xf32>
    %121 = vector.extract_strided_slice %64 {offsets = [1, 0], sizes = [1, 16], strides = [1, 1]} : vector<4x16xf32> to vector<1x16xf32>
    %cst_54 = arith.constant dense<0.000000e+00> : vector<1x16xf32>
    %122 = tpu.matmul %102, %15, %cst_54 {dimension_numbers = #tpu.dot_dimension_numbers<[1], [0], [0], [1], [0, 0, 1, 1], [], []>} : vector<1x16xf32>, vector<16x16xf32>, vector<1x16xf32> -> vector<1x16xf32>
    %123 = arith.addf %121, %122 : vector<1x16xf32>
    %124 = arith.negf %123 : vector<1x16xf32>
    %125 = math.exp %124 : vector<1x16xf32>
    %cst_55 = arith.constant 1.000000e+00 : f32
    %126 = vector.broadcast %cst_55 : f32 to vector<1x16xf32>
    %127 = arith.addf %126, %125 : vector<1x16xf32>
    %128 = arith.divf %126, %127 : vector<1x16xf32>
    %129 = vector.extract_strided_slice %67 {offsets = [1, 0], sizes = [1, 16], strides = [1, 1]} : vector<4x16xf32> to vector<1x16xf32>
    %cst_56 = arith.constant dense<0.000000e+00> : vector<1x16xf32>
    %130 = tpu.matmul %102, %16, %cst_56 {dimension_numbers = #tpu.dot_dimension_numbers<[1], [0], [0], [1], [0, 0, 1, 1], [], []>} : vector<1x16xf32>, vector<16x16xf32>, vector<1x16xf32> -> vector<1x16xf32>
    %131 = arith.addf %129, %130 : vector<1x16xf32>
    %132 = math.tanh %131 : vector<1x16xf32>
    %133 = arith.mulf %120, %100 : vector<1x16xf32>
    %134 = arith.mulf %112, %132 : vector<1x16xf32>
    %135 = arith.addf %133, %134 : vector<1x16xf32>
    %136 = math.tanh %135 : vector<1x16xf32>
    %137 = arith.mulf %128, %136 : vector<1x16xf32>
    %cst_57 = arith.constant 0.000000e+00 : f32
    %138 = vector.broadcast %cst_57 : f32 to vector<1x16xf32>
    %139 = arith.maximumf %137, %138 : vector<1x16xf32>
    %140 = vector.extract_strided_slice %58 {offsets = [2, 0], sizes = [1, 16], strides = [1, 1]} : vector<4x16xf32> to vector<1x16xf32>
    %cst_58 = arith.constant dense<0.000000e+00> : vector<1x16xf32>
    %141 = tpu.matmul %137, %13, %cst_58 {dimension_numbers = #tpu.dot_dimension_numbers<[1], [0], [0], [1], [0, 0, 1, 1], [], []>} : vector<1x16xf32>, vector<16x16xf32>, vector<1x16xf32> -> vector<1x16xf32>
    %142 = arith.addf %140, %141 : vector<1x16xf32>
    %143 = arith.negf %142 : vector<1x16xf32>
    %144 = math.exp %143 : vector<1x16xf32>
    %cst_59 = arith.constant 1.000000e+00 : f32
    %145 = vector.broadcast %cst_59 : f32 to vector<1x16xf32>
    %146 = arith.addf %145, %144 : vector<1x16xf32>
    %147 = arith.divf %145, %146 : vector<1x16xf32>
    %148 = vector.extract_strided_slice %61 {offsets = [2, 0], sizes = [1, 16], strides = [1, 1]} : vector<4x16xf32> to vector<1x16xf32>
    %cst_60 = arith.constant dense<0.000000e+00> : vector<1x16xf32>
    %149 = tpu.matmul %137, %14, %cst_60 {dimension_numbers = #tpu.dot_dimension_numbers<[1], [0], [0], [1], [0, 0, 1, 1], [], []>} : vector<1x16xf32>, vector<16x16xf32>, vector<1x16xf32> -> vector<1x16xf32>
    %150 = arith.addf %148, %149 : vector<1x16xf32>
    %151 = arith.negf %150 : vector<1x16xf32>
    %152 = math.exp %151 : vector<1x16xf32>
    %cst_61 = arith.constant 1.000000e+00 : f32
    %153 = vector.broadcast %cst_61 : f32 to vector<1x16xf32>
    %154 = arith.addf %153, %152 : vector<1x16xf32>
    %155 = arith.divf %153, %154 : vector<1x16xf32>
    %156 = vector.extract_strided_slice %64 {offsets = [2, 0], sizes = [1, 16], strides = [1, 1]} : vector<4x16xf32> to vector<1x16xf32>
    %cst_62 = arith.constant dense<0.000000e+00> : vector<1x16xf32>
    %157 = tpu.matmul %137, %15, %cst_62 {dimension_numbers = #tpu.dot_dimension_numbers<[1], [0], [0], [1], [0, 0, 1, 1], [], []>} : vector<1x16xf32>, vector<16x16xf32>, vector<1x16xf32> -> vector<1x16xf32>
    %158 = arith.addf %156, %157 : vector<1x16xf32>
    %159 = arith.negf %158 : vector<1x16xf32>
    %160 = math.exp %159 : vector<1x16xf32>
    %cst_63 = arith.constant 1.000000e+00 : f32
    %161 = vector.broadcast %cst_63 : f32 to vector<1x16xf32>
    %162 = arith.addf %161, %160 : vector<1x16xf32>
    %163 = arith.divf %161, %162 : vector<1x16xf32>
    %164 = vector.extract_strided_slice %67 {offsets = [2, 0], sizes = [1, 16], strides = [1, 1]} : vector<4x16xf32> to vector<1x16xf32>
    %cst_64 = arith.constant dense<0.000000e+00> : vector<1x16xf32>
    %165 = tpu.matmul %137, %16, %cst_64 {dimension_numbers = #tpu.dot_dimension_numbers<[1], [0], [0], [1], [0, 0, 1, 1], [], []>} : vector<1x16xf32>, vector<16x16xf32>, vector<1x16xf32> -> vector<1x16xf32>
    %166 = arith.addf %164, %165 : vector<1x16xf32>
    %167 = math.tanh %166 : vector<1x16xf32>
    %168 = arith.mulf %155, %135 : vector<1x16xf32>
    %169 = arith.mulf %147, %167 : vector<1x16xf32>
    %170 = arith.addf %168, %169 : vector<1x16xf32>
    %171 = math.tanh %170 : vector<1x16xf32>
    %172 = arith.mulf %163, %171 : vector<1x16xf32>
    %cst_65 = arith.constant 0.000000e+00 : f32
    %173 = vector.broadcast %cst_65 : f32 to vector<1x16xf32>
    %174 = arith.maximumf %172, %173 : vector<1x16xf32>
    %175 = vector.extract_strided_slice %58 {offsets = [3, 0], sizes = [1, 16], strides = [1, 1]} : vector<4x16xf32> to vector<1x16xf32>
    %cst_66 = arith.constant dense<0.000000e+00> : vector<1x16xf32>
    %176 = tpu.matmul %172, %13, %cst_66 {dimension_numbers = #tpu.dot_dimension_numbers<[1], [0], [0], [1], [0, 0, 1, 1], [], []>} : vector<1x16xf32>, vector<16x16xf32>, vector<1x16xf32> -> vector<1x16xf32>
    %177 = arith.addf %175, %176 : vector<1x16xf32>
    %178 = arith.negf %177 : vector<1x16xf32>
    %179 = math.exp %178 : vector<1x16xf32>
    %cst_67 = arith.constant 1.000000e+00 : f32
    %180 = vector.broadcast %cst_67 : f32 to vector<1x16xf32>
    %181 = arith.addf %180, %179 : vector<1x16xf32>
    %182 = arith.divf %180, %181 : vector<1x16xf32>
    %183 = vector.extract_strided_slice %61 {offsets = [3, 0], sizes = [1, 16], strides = [1, 1]} : vector<4x16xf32> to vector<1x16xf32>
    %cst_68 = arith.constant dense<0.000000e+00> : vector<1x16xf32>
    %184 = tpu.matmul %172, %14, %cst_68 {dimension_numbers = #tpu.dot_dimension_numbers<[1], [0], [0], [1], [0, 0, 1, 1], [], []>} : vector<1x16xf32>, vector<16x16xf32>, vector<1x16xf32> -> vector<1x16xf32>
    %185 = arith.addf %183, %184 : vector<1x16xf32>
    %186 = arith.negf %185 : vector<1x16xf32>
    %187 = math.exp %186 : vector<1x16xf32>
    %cst_69 = arith.constant 1.000000e+00 : f32
    %188 = vector.broadcast %cst_69 : f32 to vector<1x16xf32>
    %189 = arith.addf %188, %187 : vector<1x16xf32>
    %190 = arith.divf %188, %189 : vector<1x16xf32>
    %191 = vector.extract_strided_slice %64 {offsets = [3, 0], sizes = [1, 16], strides = [1, 1]} : vector<4x16xf32> to vector<1x16xf32>
    %cst_70 = arith.constant dense<0.000000e+00> : vector<1x16xf32>
    %192 = tpu.matmul %172, %15, %cst_70 {dimension_numbers = #tpu.dot_dimension_numbers<[1], [0], [0], [1], [0, 0, 1, 1], [], []>} : vector<1x16xf32>, vector<16x16xf32>, vector<1x16xf32> -> vector<1x16xf32>
    %193 = arith.addf %191, %192 : vector<1x16xf32>
    %194 = arith.negf %193 : vector<1x16xf32>
    %195 = math.exp %194 : vector<1x16xf32>
    %cst_71 = arith.constant 1.000000e+00 : f32
    %196 = vector.broadcast %cst_71 : f32 to vector<1x16xf32>
    %197 = arith.addf %196, %195 : vector<1x16xf32>
    %198 = arith.divf %196, %197 : vector<1x16xf32>
    %199 = vector.extract_strided_slice %67 {offsets = [3, 0], sizes = [1, 16], strides = [1, 1]} : vector<4x16xf32> to vector<1x16xf32>
    %cst_72 = arith.constant dense<0.000000e+00> : vector<1x16xf32>
    %200 = tpu.matmul %172, %16, %cst_72 {dimension_numbers = #tpu.dot_dimension_numbers<[1], [0], [0], [1], [0, 0, 1, 1], [], []>} : vector<1x16xf32>, vector<16x16xf32>, vector<1x16xf32> -> vector<1x16xf32>
    %201 = arith.addf %199, %200 : vector<1x16xf32>
    %202 = math.tanh %201 : vector<1x16xf32>
    %203 = arith.mulf %190, %170 : vector<1x16xf32>
    %204 = arith.mulf %182, %202 : vector<1x16xf32>
    %205 = arith.addf %203, %204 : vector<1x16xf32>
    %206 = math.tanh %205 : vector<1x16xf32>
    %207 = arith.mulf %198, %206 : vector<1x16xf32>
    %cst_73 = arith.constant 0.000000e+00 : f32
    %208 = vector.broadcast %cst_73 : f32 to vector<1x16xf32>
    %209 = arith.maximumf %207, %208 : vector<1x16xf32>
    %210 = tpu.concatenate %104, %139, %174, %209 in 0 : vector<1x16xf32>, vector<1x16xf32>, vector<1x16xf32>, vector<1x16xf32> -> vector<4x16xf32>
    %cst_74 = arith.constant dense<0.000000e+00> : vector<4x16xf32>
    %211 = tpu.matmul %210, %25, %cst_74 {dimension_numbers = #tpu.dot_dimension_numbers<[1], [0], [0], [1], [0, 0, 1, 1], [], []>} : vector<4x16xf32>, vector<16x16xf32>, vector<4x16xf32> -> vector<4x16xf32>
    %cst_75 = arith.constant dense<0.000000e+00> : vector<4x16xf32>
    %212 = tpu.matmul %1, %21, %cst_75 {dimension_numbers = #tpu.dot_dimension_numbers<[1], [0], [0], [1], [0, 0, 1, 1], [], []>} : vector<4x6xf32>, vector<6x16xf32>, vector<4x16xf32> -> vector<4x16xf32>
    %213 = vector.broadcast %22 : vector<1x16xf32> to vector<4x16xf32>
    %214 = arith.addf %212, %213 : vector<4x16xf32>
    %215 = vector.shape_cast %24 : vector<1x32xf32> to vector<1x32xf32>
    %216 = vector.broadcast %215 : vector<1x32xf32> to vector<4x32xf32>
    %217 = vector.shape_cast %27 : vector<1x16xf32> to vector<1x16xf32>
    %218 = vector.broadcast %217 : vector<1x16xf32> to vector<4x16xf32>
    %219 = vector.shape_cast %29 : vector<1x8xf32> to vector<1x8xf32>
    %220 = vector.broadcast %219 : vector<1x8xf32> to vector<4x8xf32>
    %221 = vector.shape_cast %31 : vector<1x1xf32> to vector<1x1xf32>
    %222 = vector.broadcast %221 : vector<1x1xf32> to vector<4x1xf32>
    %223 = tpu.iota {dimensions = array<i32: 0>} : vector<4x1xi32>
    %cst_76 = arith.constant 0.000000e+00 : f32
    %224 = vector.broadcast %cst_76 : f32 to vector<1x1xf32>
    %c0_i32 = arith.constant 0 : i32
    %225 = vector.broadcast %c0_i32 : i32 to vector<4x1xi32>
    %226 = arith.cmpi sle, %223, %225 : vector<4x1xi32>
    %227 = arith.extui %226 : vector<4x1xi1> to vector<4x1xi32>
    %228 = arith.sitofp %227 : vector<4x1xi32> to vector<4x1xf32>
    %cst_77 = arith.constant dense<0.000000e+00> : vector<4x32xf32>
    %229 = tpu.matmul %214, %23, %cst_77 {dimension_numbers = #tpu.dot_dimension_numbers<[1], [0], [0], [1], [0, 0, 1, 1], [], []>} : vector<4x16xf32>, vector<16x32xf32>, vector<4x32xf32> -> vector<4x32xf32>
    %230 = arith.addf %229, %216 : vector<4x32xf32>
    %231 = vector.extract_strided_slice %230 {offsets = [0, 0], sizes = [4, 16], strides = [1, 1]} : vector<4x32xf32> to vector<4x16xf32>
    %232 = arith.negf %231 : vector<4x16xf32>
    %233 = math.exp %232 : vector<4x16xf32>
    %cst_78 = arith.constant 1.000000e+00 : f32
    %234 = vector.broadcast %cst_78 : f32 to vector<4x16xf32>
    %235 = arith.addf %234, %233 : vector<4x16xf32>
    %236 = arith.divf %234, %235 : vector<4x16xf32>
    %237 = vector.extract_strided_slice %230 {offsets = [0, 16], sizes = [4, 16], strides = [1, 1]} : vector<4x32xf32> to vector<4x16xf32>
    %238 = arith.addf %237, %211 : vector<4x16xf32>
    %cst_79 = arith.constant 0.000000e+00 : f32
    %239 = vector.broadcast %cst_79 : f32 to vector<4x16xf32>
    %240 = arith.maximumf %238, %239 : vector<4x16xf32>
    %cst_80 = arith.constant dense<0.000000e+00> : vector<4x16xf32>
    %241 = tpu.matmul %240, %26, %cst_80 {dimension_numbers = #tpu.dot_dimension_numbers<[1], [0], [0], [1], [0, 0, 1, 1], [], []>} : vector<4x16xf32>, vector<16x16xf32>, vector<4x16xf32> -> vector<4x16xf32>
    %242 = arith.addf %241, %218 : vector<4x16xf32>
    %243 = arith.mulf %242, %236 : vector<4x16xf32>
    %244 = vector.broadcast %228 : vector<4x1xf32> to vector<4x16xf32>
    %245 = arith.mulf %243, %244 : vector<4x16xf32>
    %cst_81 = arith.constant dense<0.000000e+00> : vector<16xf32>
    %246 = vector.multi_reduction <add>, %245, %cst_81 [0] : vector<4x16xf32> to vector<16xf32>
    %247 = vector.shape_cast %246 : vector<16xf32> to vector<1x16xf32>
    %cst_82 = arith.constant 1.000000e+00 : f32
    %248 = vector.broadcast %cst_82 : f32 to vector<1x16xf32>
    %249 = arith.mulf %247, %248 : vector<1x16xf32>
    %250 = vector.broadcast %249 : vector<1x16xf32> to vector<4x16xf32>
    %251 = arith.addf %214, %250 : vector<4x16xf32>
    %cst_83 = arith.constant dense<0.000000e+00> : vector<4xf32>
    %252 = vector.multi_reduction <add>, %251, %cst_83 [1] : vector<4x16xf32> to vector<4xf32>
    %253 = vector.shape_cast %252 : vector<4xf32> to vector<4x1xf32>
    %cst_84 = arith.constant 1.600000e+01 : f32
    %254 = vector.broadcast %cst_84 : f32 to vector<4x1xf32>
    %255 = arith.divf %253, %254 : vector<4x1xf32>
    %256 = vector.broadcast %255 : vector<4x1xf32> to vector<4x16xf32>
    %257 = arith.subf %251, %256 : vector<4x16xf32>
    %258 = vector.broadcast %255 : vector<4x1xf32> to vector<4x16xf32>
    %259 = arith.subf %251, %258 : vector<4x16xf32>
    %260 = arith.mulf %257, %259 : vector<4x16xf32>
    %cst_85 = arith.constant dense<0.000000e+00> : vector<4xf32>
    %261 = vector.multi_reduction <add>, %260, %cst_85 [1] : vector<4x16xf32> to vector<4xf32>
    %262 = vector.shape_cast %261 : vector<4xf32> to vector<4x1xf32>
    %cst_86 = arith.constant 1.600000e+01 : f32
    %263 = vector.broadcast %cst_86 : f32 to vector<4x1xf32>
    %264 = arith.divf %262, %263 : vector<4x1xf32>
    %265 = vector.broadcast %255 : vector<4x1xf32> to vector<4x16xf32>
    %266 = arith.subf %251, %265 : vector<4x16xf32>
    %cst_87 = arith.constant 9.99999974E-6 : f32
    %267 = vector.broadcast %cst_87 : f32 to vector<4x1xf32>
    %268 = arith.addf %264, %267 : vector<4x1xf32>
    %269 = math.rsqrt %268 : vector<4x1xf32>
    %270 = vector.broadcast %269 : vector<4x1xf32> to vector<4x16xf32>
    %271 = arith.mulf %266, %270 : vector<4x16xf32>
    %272 = vector.broadcast %228 : vector<4x1xf32> to vector<4x16xf32>
    %273 = arith.mulf %272, %271 : vector<4x16xf32>
    %cst_88 = arith.constant 1.000000e+00 : f32
    %274 = vector.broadcast %cst_88 : f32 to vector<4x1xf32>
    %275 = arith.subf %274, %228 : vector<4x1xf32>
    %276 = vector.broadcast %275 : vector<4x1xf32> to vector<4x16xf32>
    %277 = arith.mulf %276, %214 : vector<4x16xf32>
    %278 = arith.addf %273, %277 : vector<4x16xf32>
    %cst_89 = arith.constant dense<0.000000e+00> : vector<4x8xf32>
    %279 = tpu.matmul %278, %28, %cst_89 {dimension_numbers = #tpu.dot_dimension_numbers<[1], [0], [0], [1], [0, 0, 1, 1], [], []>} : vector<4x16xf32>, vector<16x8xf32>, vector<4x8xf32> -> vector<4x8xf32>
    %280 = arith.addf %279, %220 : vector<4x8xf32>
    %cst_90 = arith.constant 0.000000e+00 : f32
    %281 = vector.broadcast %cst_90 : f32 to vector<4x8xf32>
    %282 = arith.maximumf %280, %281 : vector<4x8xf32>
    %cst_91 = arith.constant dense<0.000000e+00> : vector<4x1xf32>
    %283 = tpu.matmul %282, %30, %cst_91 {dimension_numbers = #tpu.dot_dimension_numbers<[1], [0], [0], [1], [0, 0, 1, 1], [], []>} : vector<4x8xf32>, vector<8x1xf32>, vector<4x1xf32> -> vector<4x1xf32>
    %284 = arith.addf %283, %222 : vector<4x1xf32>
    %285 = arith.negf %284 : vector<4x1xf32>
    %286 = math.exp %285 : vector<4x1xf32>
    %cst_92 = arith.constant 1.000000e+00 : f32
    %287 = vector.broadcast %cst_92 : f32 to vector<4x1xf32>
    %288 = arith.addf %287, %286 : vector<4x1xf32>
    %289 = arith.divf %287, %288 : vector<4x1xf32>
    %290 = arith.subf %2, %289 : vector<4x1xf32>
    %291 = math.absf %290 : vector<4x1xf32>
    %292 = arith.mulf %291, %228 : vector<4x1xf32>
    %cst_93 = arith.constant dense<0.000000e+00> : vector<1xf32>
    %293 = vector.multi_reduction <add>, %292, %cst_93 [0] : vector<4x1xf32> to vector<1xf32>
    %294 = vector.shape_cast %293 : vector<1xf32> to vector<1x1xf32>
    %cst_94 = arith.constant 1.000000e+00 : f32
    %295 = vector.broadcast %cst_94 : f32 to vector<1x1xf32>
    %296 = arith.mulf %294, %295 : vector<1x1xf32>
    %297 = arith.addf %224, %296 : vector<1x1xf32>
    %c1_i32 = arith.constant 1 : i32
    %298 = vector.broadcast %c1_i32 : i32 to vector<4x1xi32>
    %299 = arith.cmpi sle, %223, %298 : vector<4x1xi32>
    %300 = arith.extui %299 : vector<4x1xi1> to vector<4x1xi32>
    %301 = arith.sitofp %300 : vector<4x1xi32> to vector<4x1xf32>
    %cst_95 = arith.constant dense<0.000000e+00> : vector<4x32xf32>
    %302 = tpu.matmul %278, %23, %cst_95 {dimension_numbers = #tpu.dot_dimension_numbers<[1], [0], [0], [1], [0, 0, 1, 1], [], []>} : vector<4x16xf32>, vector<16x32xf32>, vector<4x32xf32> -> vector<4x32xf32>
    %303 = arith.addf %302, %216 : vector<4x32xf32>
    %304 = vector.extract_strided_slice %303 {offsets = [0, 0], sizes = [4, 16], strides = [1, 1]} : vector<4x32xf32> to vector<4x16xf32>
    %305 = arith.negf %304 : vector<4x16xf32>
    %306 = math.exp %305 : vector<4x16xf32>
    %cst_96 = arith.constant 1.000000e+00 : f32
    %307 = vector.broadcast %cst_96 : f32 to vector<4x16xf32>
    %308 = arith.addf %307, %306 : vector<4x16xf32>
    %309 = arith.divf %307, %308 : vector<4x16xf32>
    %310 = vector.extract_strided_slice %303 {offsets = [0, 16], sizes = [4, 16], strides = [1, 1]} : vector<4x32xf32> to vector<4x16xf32>
    %311 = arith.addf %310, %211 : vector<4x16xf32>
    %cst_97 = arith.constant 0.000000e+00 : f32
    %312 = vector.broadcast %cst_97 : f32 to vector<4x16xf32>
    %313 = arith.maximumf %311, %312 : vector<4x16xf32>
    %cst_98 = arith.constant dense<0.000000e+00> : vector<4x16xf32>
    %314 = tpu.matmul %313, %26, %cst_98 {dimension_numbers = #tpu.dot_dimension_numbers<[1], [0], [0], [1], [0, 0, 1, 1], [], []>} : vector<4x16xf32>, vector<16x16xf32>, vector<4x16xf32> -> vector<4x16xf32>
    %315 = arith.addf %314, %218 : vector<4x16xf32>
    %316 = arith.mulf %315, %309 : vector<4x16xf32>
    %317 = vector.broadcast %301 : vector<4x1xf32> to vector<4x16xf32>
    %318 = arith.mulf %316, %317 : vector<4x16xf32>
    %cst_99 = arith.constant dense<0.000000e+00> : vector<16xf32>
    %319 = vector.multi_reduction <add>, %318, %cst_99 [0] : vector<4x16xf32> to vector<16xf32>
    %320 = vector.shape_cast %319 : vector<16xf32> to vector<1x16xf32>
    %cst_100 = arith.constant 5.000000e-01 : f32
    %321 = vector.broadcast %cst_100 : f32 to vector<1x16xf32>
    %322 = arith.mulf %320, %321 : vector<1x16xf32>
    %323 = vector.broadcast %322 : vector<1x16xf32> to vector<4x16xf32>
    %324 = arith.addf %278, %323 : vector<4x16xf32>
    %cst_101 = arith.constant dense<0.000000e+00> : vector<4xf32>
    %325 = vector.multi_reduction <add>, %324, %cst_101 [1] : vector<4x16xf32> to vector<4xf32>
    %326 = vector.shape_cast %325 : vector<4xf32> to vector<4x1xf32>
    %cst_102 = arith.constant 1.600000e+01 : f32
    %327 = vector.broadcast %cst_102 : f32 to vector<4x1xf32>
    %328 = arith.divf %326, %327 : vector<4x1xf32>
    %329 = vector.broadcast %328 : vector<4x1xf32> to vector<4x16xf32>
    %330 = arith.subf %324, %329 : vector<4x16xf32>
    %331 = vector.broadcast %328 : vector<4x1xf32> to vector<4x16xf32>
    %332 = arith.subf %324, %331 : vector<4x16xf32>
    %333 = arith.mulf %330, %332 : vector<4x16xf32>
    %cst_103 = arith.constant dense<0.000000e+00> : vector<4xf32>
    %334 = vector.multi_reduction <add>, %333, %cst_103 [1] : vector<4x16xf32> to vector<4xf32>
    %335 = vector.shape_cast %334 : vector<4xf32> to vector<4x1xf32>
    %cst_104 = arith.constant 1.600000e+01 : f32
    %336 = vector.broadcast %cst_104 : f32 to vector<4x1xf32>
    %337 = arith.divf %335, %336 : vector<4x1xf32>
    %338 = vector.broadcast %328 : vector<4x1xf32> to vector<4x16xf32>
    %339 = arith.subf %324, %338 : vector<4x16xf32>
    %cst_105 = arith.constant 9.99999974E-6 : f32
    %340 = vector.broadcast %cst_105 : f32 to vector<4x1xf32>
    %341 = arith.addf %337, %340 : vector<4x1xf32>
    %342 = math.rsqrt %341 : vector<4x1xf32>
    %343 = vector.broadcast %342 : vector<4x1xf32> to vector<4x16xf32>
    %344 = arith.mulf %339, %343 : vector<4x16xf32>
    %345 = vector.broadcast %301 : vector<4x1xf32> to vector<4x16xf32>
    %346 = arith.mulf %345, %344 : vector<4x16xf32>
    %cst_106 = arith.constant 1.000000e+00 : f32
    %347 = vector.broadcast %cst_106 : f32 to vector<4x1xf32>
    %348 = arith.subf %347, %301 : vector<4x1xf32>
    %349 = vector.broadcast %348 : vector<4x1xf32> to vector<4x16xf32>
    %350 = arith.mulf %349, %278 : vector<4x16xf32>
    %351 = arith.addf %346, %350 : vector<4x16xf32>
    %cst_107 = arith.constant dense<0.000000e+00> : vector<4x8xf32>
    %352 = tpu.matmul %351, %28, %cst_107 {dimension_numbers = #tpu.dot_dimension_numbers<[1], [0], [0], [1], [0, 0, 1, 1], [], []>} : vector<4x16xf32>, vector<16x8xf32>, vector<4x8xf32> -> vector<4x8xf32>
    %353 = arith.addf %352, %220 : vector<4x8xf32>
    %cst_108 = arith.constant 0.000000e+00 : f32
    %354 = vector.broadcast %cst_108 : f32 to vector<4x8xf32>
    %355 = arith.maximumf %353, %354 : vector<4x8xf32>
    %cst_109 = arith.constant dense<0.000000e+00> : vector<4x1xf32>
    %356 = tpu.matmul %355, %30, %cst_109 {dimension_numbers = #tpu.dot_dimension_numbers<[1], [0], [0], [1], [0, 0, 1, 1], [], []>} : vector<4x8xf32>, vector<8x1xf32>, vector<4x1xf32> -> vector<4x1xf32>
    %357 = arith.addf %356, %222 : vector<4x1xf32>
    %358 = arith.negf %357 : vector<4x1xf32>
    %359 = math.exp %358 : vector<4x1xf32>
    %cst_110 = arith.constant 1.000000e+00 : f32
    %360 = vector.broadcast %cst_110 : f32 to vector<4x1xf32>
    %361 = arith.addf %360, %359 : vector<4x1xf32>
    %362 = arith.divf %360, %361 : vector<4x1xf32>
    %363 = arith.subf %2, %362 : vector<4x1xf32>
    %364 = math.absf %363 : vector<4x1xf32>
    %365 = arith.mulf %364, %301 : vector<4x1xf32>
    %cst_111 = arith.constant dense<0.000000e+00> : vector<1xf32>
    %366 = vector.multi_reduction <add>, %365, %cst_111 [0] : vector<4x1xf32> to vector<1xf32>
    %367 = vector.shape_cast %366 : vector<1xf32> to vector<1x1xf32>
    %cst_112 = arith.constant 5.000000e-01 : f32
    %368 = vector.broadcast %cst_112 : f32 to vector<1x1xf32>
    %369 = arith.mulf %367, %368 : vector<1x1xf32>
    %370 = arith.addf %297, %369 : vector<1x1xf32>
    %c2_i32 = arith.constant 2 : i32
    %371 = vector.broadcast %c2_i32 : i32 to vector<4x1xi32>
    %372 = arith.cmpi sle, %223, %371 : vector<4x1xi32>
    %373 = arith.extui %372 : vector<4x1xi1> to vector<4x1xi32>
    %374 = arith.sitofp %373 : vector<4x1xi32> to vector<4x1xf32>
    %cst_113 = arith.constant dense<0.000000e+00> : vector<4x32xf32>
    %375 = tpu.matmul %351, %23, %cst_113 {dimension_numbers = #tpu.dot_dimension_numbers<[1], [0], [0], [1], [0, 0, 1, 1], [], []>} : vector<4x16xf32>, vector<16x32xf32>, vector<4x32xf32> -> vector<4x32xf32>
    %376 = arith.addf %375, %216 : vector<4x32xf32>
    %377 = vector.extract_strided_slice %376 {offsets = [0, 0], sizes = [4, 16], strides = [1, 1]} : vector<4x32xf32> to vector<4x16xf32>
    %378 = arith.negf %377 : vector<4x16xf32>
    %379 = math.exp %378 : vector<4x16xf32>
    %cst_114 = arith.constant 1.000000e+00 : f32
    %380 = vector.broadcast %cst_114 : f32 to vector<4x16xf32>
    %381 = arith.addf %380, %379 : vector<4x16xf32>
    %382 = arith.divf %380, %381 : vector<4x16xf32>
    %383 = vector.extract_strided_slice %376 {offsets = [0, 16], sizes = [4, 16], strides = [1, 1]} : vector<4x32xf32> to vector<4x16xf32>
    %384 = arith.addf %383, %211 : vector<4x16xf32>
    %cst_115 = arith.constant 0.000000e+00 : f32
    %385 = vector.broadcast %cst_115 : f32 to vector<4x16xf32>
    %386 = arith.maximumf %384, %385 : vector<4x16xf32>
    %cst_116 = arith.constant dense<0.000000e+00> : vector<4x16xf32>
    %387 = tpu.matmul %386, %26, %cst_116 {dimension_numbers = #tpu.dot_dimension_numbers<[1], [0], [0], [1], [0, 0, 1, 1], [], []>} : vector<4x16xf32>, vector<16x16xf32>, vector<4x16xf32> -> vector<4x16xf32>
    %388 = arith.addf %387, %218 : vector<4x16xf32>
    %389 = arith.mulf %388, %382 : vector<4x16xf32>
    %390 = vector.broadcast %374 : vector<4x1xf32> to vector<4x16xf32>
    %391 = arith.mulf %389, %390 : vector<4x16xf32>
    %cst_117 = arith.constant dense<0.000000e+00> : vector<16xf32>
    %392 = vector.multi_reduction <add>, %391, %cst_117 [0] : vector<4x16xf32> to vector<16xf32>
    %393 = vector.shape_cast %392 : vector<16xf32> to vector<1x16xf32>
    %cst_118 = arith.constant 0.333333343 : f32
    %394 = vector.broadcast %cst_118 : f32 to vector<1x16xf32>
    %395 = arith.mulf %393, %394 : vector<1x16xf32>
    %396 = vector.broadcast %395 : vector<1x16xf32> to vector<4x16xf32>
    %397 = arith.addf %351, %396 : vector<4x16xf32>
    %cst_119 = arith.constant dense<0.000000e+00> : vector<4xf32>
    %398 = vector.multi_reduction <add>, %397, %cst_119 [1] : vector<4x16xf32> to vector<4xf32>
    %399 = vector.shape_cast %398 : vector<4xf32> to vector<4x1xf32>
    %cst_120 = arith.constant 1.600000e+01 : f32
    %400 = vector.broadcast %cst_120 : f32 to vector<4x1xf32>
    %401 = arith.divf %399, %400 : vector<4x1xf32>
    %402 = vector.broadcast %401 : vector<4x1xf32> to vector<4x16xf32>
    %403 = arith.subf %397, %402 : vector<4x16xf32>
    %404 = vector.broadcast %401 : vector<4x1xf32> to vector<4x16xf32>
    %405 = arith.subf %397, %404 : vector<4x16xf32>
    %406 = arith.mulf %403, %405 : vector<4x16xf32>
    %cst_121 = arith.constant dense<0.000000e+00> : vector<4xf32>
    %407 = vector.multi_reduction <add>, %406, %cst_121 [1] : vector<4x16xf32> to vector<4xf32>
    %408 = vector.shape_cast %407 : vector<4xf32> to vector<4x1xf32>
    %cst_122 = arith.constant 1.600000e+01 : f32
    %409 = vector.broadcast %cst_122 : f32 to vector<4x1xf32>
    %410 = arith.divf %408, %409 : vector<4x1xf32>
    %411 = vector.broadcast %401 : vector<4x1xf32> to vector<4x16xf32>
    %412 = arith.subf %397, %411 : vector<4x16xf32>
    %cst_123 = arith.constant 9.99999974E-6 : f32
    %413 = vector.broadcast %cst_123 : f32 to vector<4x1xf32>
    %414 = arith.addf %410, %413 : vector<4x1xf32>
    %415 = math.rsqrt %414 : vector<4x1xf32>
    %416 = vector.broadcast %415 : vector<4x1xf32> to vector<4x16xf32>
    %417 = arith.mulf %412, %416 : vector<4x16xf32>
    %418 = vector.broadcast %374 : vector<4x1xf32> to vector<4x16xf32>
    %419 = arith.mulf %418, %417 : vector<4x16xf32>
    %cst_124 = arith.constant 1.000000e+00 : f32
    %420 = vector.broadcast %cst_124 : f32 to vector<4x1xf32>
    %421 = arith.subf %420, %374 : vector<4x1xf32>
    %422 = vector.broadcast %421 : vector<4x1xf32> to vector<4x16xf32>
    %423 = arith.mulf %422, %351 : vector<4x16xf32>
    %424 = arith.addf %419, %423 : vector<4x16xf32>
    %cst_125 = arith.constant dense<0.000000e+00> : vector<4x8xf32>
    %425 = tpu.matmul %424, %28, %cst_125 {dimension_numbers = #tpu.dot_dimension_numbers<[1], [0], [0], [1], [0, 0, 1, 1], [], []>} : vector<4x16xf32>, vector<16x8xf32>, vector<4x8xf32> -> vector<4x8xf32>
    %426 = arith.addf %425, %220 : vector<4x8xf32>
    %cst_126 = arith.constant 0.000000e+00 : f32
    %427 = vector.broadcast %cst_126 : f32 to vector<4x8xf32>
    %428 = arith.maximumf %426, %427 : vector<4x8xf32>
    %cst_127 = arith.constant dense<0.000000e+00> : vector<4x1xf32>
    %429 = tpu.matmul %428, %30, %cst_127 {dimension_numbers = #tpu.dot_dimension_numbers<[1], [0], [0], [1], [0, 0, 1, 1], [], []>} : vector<4x8xf32>, vector<8x1xf32>, vector<4x1xf32> -> vector<4x1xf32>
    %430 = arith.addf %429, %222 : vector<4x1xf32>
    %431 = arith.negf %430 : vector<4x1xf32>
    %432 = math.exp %431 : vector<4x1xf32>
    %cst_128 = arith.constant 1.000000e+00 : f32
    %433 = vector.broadcast %cst_128 : f32 to vector<4x1xf32>
    %434 = arith.addf %433, %432 : vector<4x1xf32>
    %435 = arith.divf %433, %434 : vector<4x1xf32>
    %436 = arith.subf %2, %435 : vector<4x1xf32>
    %437 = math.absf %436 : vector<4x1xf32>
    %438 = arith.mulf %437, %374 : vector<4x1xf32>
    %cst_129 = arith.constant dense<0.000000e+00> : vector<1xf32>
    %439 = vector.multi_reduction <add>, %438, %cst_129 [0] : vector<4x1xf32> to vector<1xf32>
    %440 = vector.shape_cast %439 : vector<1xf32> to vector<1x1xf32>
    %cst_130 = arith.constant 0.333333343 : f32
    %441 = vector.broadcast %cst_130 : f32 to vector<1x1xf32>
    %442 = arith.mulf %440, %441 : vector<1x1xf32>
    %443 = arith.addf %370, %442 : vector<1x1xf32>
    %c3_i32 = arith.constant 3 : i32
    %444 = vector.broadcast %c3_i32 : i32 to vector<4x1xi32>
    %445 = arith.cmpi sle, %223, %444 : vector<4x1xi32>
    %446 = arith.extui %445 : vector<4x1xi1> to vector<4x1xi32>
    %447 = arith.sitofp %446 : vector<4x1xi32> to vector<4x1xf32>
    %cst_131 = arith.constant dense<0.000000e+00> : vector<4x32xf32>
    %448 = tpu.matmul %424, %23, %cst_131 {dimension_numbers = #tpu.dot_dimension_numbers<[1], [0], [0], [1], [0, 0, 1, 1], [], []>} : vector<4x16xf32>, vector<16x32xf32>, vector<4x32xf32> -> vector<4x32xf32>
    %449 = arith.addf %448, %216 : vector<4x32xf32>
    %450 = vector.extract_strided_slice %449 {offsets = [0, 0], sizes = [4, 16], strides = [1, 1]} : vector<4x32xf32> to vector<4x16xf32>
    %451 = arith.negf %450 : vector<4x16xf32>
    %452 = math.exp %451 : vector<4x16xf32>
    %cst_132 = arith.constant 1.000000e+00 : f32
    %453 = vector.broadcast %cst_132 : f32 to vector<4x16xf32>
    %454 = arith.addf %453, %452 : vector<4x16xf32>
    %455 = arith.divf %453, %454 : vector<4x16xf32>
    %456 = vector.extract_strided_slice %449 {offsets = [0, 16], sizes = [4, 16], strides = [1, 1]} : vector<4x32xf32> to vector<4x16xf32>
    %457 = arith.addf %456, %211 : vector<4x16xf32>
    %cst_133 = arith.constant 0.000000e+00 : f32
    %458 = vector.broadcast %cst_133 : f32 to vector<4x16xf32>
    %459 = arith.maximumf %457, %458 : vector<4x16xf32>
    %cst_134 = arith.constant dense<0.000000e+00> : vector<4x16xf32>
    %460 = tpu.matmul %459, %26, %cst_134 {dimension_numbers = #tpu.dot_dimension_numbers<[1], [0], [0], [1], [0, 0, 1, 1], [], []>} : vector<4x16xf32>, vector<16x16xf32>, vector<4x16xf32> -> vector<4x16xf32>
    %461 = arith.addf %460, %218 : vector<4x16xf32>
    %462 = arith.mulf %461, %455 : vector<4x16xf32>
    %463 = vector.broadcast %447 : vector<4x1xf32> to vector<4x16xf32>
    %464 = arith.mulf %462, %463 : vector<4x16xf32>
    %cst_135 = arith.constant dense<0.000000e+00> : vector<16xf32>
    %465 = vector.multi_reduction <add>, %464, %cst_135 [0] : vector<4x16xf32> to vector<16xf32>
    %466 = vector.shape_cast %465 : vector<16xf32> to vector<1x16xf32>
    %cst_136 = arith.constant 2.500000e-01 : f32
    %467 = vector.broadcast %cst_136 : f32 to vector<1x16xf32>
    %468 = arith.mulf %466, %467 : vector<1x16xf32>
    %469 = vector.broadcast %468 : vector<1x16xf32> to vector<4x16xf32>
    %470 = arith.addf %424, %469 : vector<4x16xf32>
    %cst_137 = arith.constant dense<0.000000e+00> : vector<4xf32>
    %471 = vector.multi_reduction <add>, %470, %cst_137 [1] : vector<4x16xf32> to vector<4xf32>
    %472 = vector.shape_cast %471 : vector<4xf32> to vector<4x1xf32>
    %cst_138 = arith.constant 1.600000e+01 : f32
    %473 = vector.broadcast %cst_138 : f32 to vector<4x1xf32>
    %474 = arith.divf %472, %473 : vector<4x1xf32>
    %475 = vector.broadcast %474 : vector<4x1xf32> to vector<4x16xf32>
    %476 = arith.subf %470, %475 : vector<4x16xf32>
    %477 = vector.broadcast %474 : vector<4x1xf32> to vector<4x16xf32>
    %478 = arith.subf %470, %477 : vector<4x16xf32>
    %479 = arith.mulf %476, %478 : vector<4x16xf32>
    %cst_139 = arith.constant dense<0.000000e+00> : vector<4xf32>
    %480 = vector.multi_reduction <add>, %479, %cst_139 [1] : vector<4x16xf32> to vector<4xf32>
    %481 = vector.shape_cast %480 : vector<4xf32> to vector<4x1xf32>
    %cst_140 = arith.constant 1.600000e+01 : f32
    %482 = vector.broadcast %cst_140 : f32 to vector<4x1xf32>
    %483 = arith.divf %481, %482 : vector<4x1xf32>
    %484 = vector.broadcast %474 : vector<4x1xf32> to vector<4x16xf32>
    %485 = arith.subf %470, %484 : vector<4x16xf32>
    %cst_141 = arith.constant 9.99999974E-6 : f32
    %486 = vector.broadcast %cst_141 : f32 to vector<4x1xf32>
    %487 = arith.addf %483, %486 : vector<4x1xf32>
    %488 = math.rsqrt %487 : vector<4x1xf32>
    %489 = vector.broadcast %488 : vector<4x1xf32> to vector<4x16xf32>
    %490 = arith.mulf %485, %489 : vector<4x16xf32>
    %491 = vector.broadcast %447 : vector<4x1xf32> to vector<4x16xf32>
    %492 = arith.mulf %491, %490 : vector<4x16xf32>
    %cst_142 = arith.constant 1.000000e+00 : f32
    %493 = vector.broadcast %cst_142 : f32 to vector<4x1xf32>
    %494 = arith.subf %493, %447 : vector<4x1xf32>
    %495 = vector.broadcast %494 : vector<4x1xf32> to vector<4x16xf32>
    %496 = arith.mulf %495, %424 : vector<4x16xf32>
    %497 = arith.addf %492, %496 : vector<4x16xf32>
    %cst_143 = arith.constant dense<0.000000e+00> : vector<4x8xf32>
    %498 = tpu.matmul %497, %28, %cst_143 {dimension_numbers = #tpu.dot_dimension_numbers<[1], [0], [0], [1], [0, 0, 1, 1], [], []>} : vector<4x16xf32>, vector<16x8xf32>, vector<4x8xf32> -> vector<4x8xf32>
    %499 = arith.addf %498, %220 : vector<4x8xf32>
    %cst_144 = arith.constant 0.000000e+00 : f32
    %500 = vector.broadcast %cst_144 : f32 to vector<4x8xf32>
    %501 = arith.maximumf %499, %500 : vector<4x8xf32>
    %cst_145 = arith.constant dense<0.000000e+00> : vector<4x1xf32>
    %502 = tpu.matmul %501, %30, %cst_145 {dimension_numbers = #tpu.dot_dimension_numbers<[1], [0], [0], [1], [0, 0, 1, 1], [], []>} : vector<4x8xf32>, vector<8x1xf32>, vector<4x1xf32> -> vector<4x1xf32>
    %503 = arith.addf %502, %222 : vector<4x1xf32>
    %504 = arith.negf %503 : vector<4x1xf32>
    %505 = math.exp %504 : vector<4x1xf32>
    %cst_146 = arith.constant 1.000000e+00 : f32
    %506 = vector.broadcast %cst_146 : f32 to vector<4x1xf32>
    %507 = arith.addf %506, %505 : vector<4x1xf32>
    %508 = arith.divf %506, %507 : vector<4x1xf32>
    %509 = arith.subf %2, %508 : vector<4x1xf32>
    %510 = math.absf %509 : vector<4x1xf32>
    %511 = arith.mulf %510, %447 : vector<4x1xf32>
    %cst_147 = arith.constant dense<0.000000e+00> : vector<1xf32>
    %512 = vector.multi_reduction <add>, %511, %cst_147 [0] : vector<4x1xf32> to vector<1xf32>
    %513 = vector.shape_cast %512 : vector<1xf32> to vector<1x1xf32>
    %cst_148 = arith.constant 2.500000e-01 : f32
    %514 = vector.broadcast %cst_148 : f32 to vector<1x1xf32>
    %515 = arith.mulf %513, %514 : vector<1x1xf32>
    %516 = arith.addf %443, %515 : vector<1x1xf32>
    %c0_149 = arith.constant 0 : index
    %c0_150 = arith.constant 0 : index
    %517 = vector.load %arg3[%c0_149, %c0_150] : memref<1x1xf32, #tpu.memory_space<vmem>>, vector<1x1xf32>
    tpu.vector_store %arg3[%c0_149, %c0_150], %516 {strides = array<i32>} : memref<1x1xf32, #tpu.memory_space<vmem>>, vector<1x1xf32>,
    return
  }
  func.func @transform_0(%arg0: i32) -> (i32, i32) {
    %c0_i32 = arith.constant 0 : i32
    %c0_i32_0 = arith.constant 0 : i32
    %c0_i32_1 = arith.constant 0 : i32
    return %c0_i32, %c0_i32_0 : i32, i32
  }
  func.func @transform_1(%arg0: i32) -> (i32, i32) {
    %c0_i32 = arith.constant 0 : i32
    %c0_i32_0 = arith.constant 0 : i32
    %c0_i32_1 = arith.constant 0 : i32
    return %c0_i32, %c0_i32_0 : i32, i32
  }
  func.func @transform_2(%arg0: i32) -> (i32, i32) {
    %c0_i32 = arith.constant 0 : i32
    %c0_i32_0 = arith.constant 0 : i32
    %c0_i32_1 = arith.constant 0 : i32
    return %c0_i32, %c0_i32_0 : i32, i32
  }
}

</mosaic_0001>

<llo_original>
// kernel: forward.1
$region0: #{forward.1}
  #allocation0 [shape = 'u32[]', space=smem, size = 0x4, offset = 0x4, fixed_abs, tag = 'smem constant byte address 0x4 - core index']
  #allocation1 [shape = 'u32[72,128]{1,0:T(1,128)}', space=vmem, size = 0x9000, scoped, tag = 'internal scratch']
  %s0 = inlined_call_operand.vmem [shape: f32[64,24], index: 0, kind: input, shape index: {}]
  %s1 = inlined_call_operand.vmem [shape: f32[328,32], index: 1, kind: input, shape index: {}]
  %s2 = inlined_call_operand.hbm [shape: f32[1,1], index: 2, kind: output, shape index: {}]
  %s3 = sld [smem:[#allocation0]]
  $region18: #{forward.1} parent=0
    _
  %s5 = ssub.s32 1, %s3
  %s6 = scalar_select 0, %s5, %s3
  $region1: #{forward.1} parent=0
    #allocation2 [shape = 'u8[512]{0}', space=vmem, size = 0x400, scoped, tag = 'output window, operand 0, single buffered']
    #allocation3 [shape = 's32[1]{0}', space=sflag, size = 0x4, scoped, tag = 'scoped memory for forward.1']
    %7 = vsyncpa [#allocation3], 0
    // Predicated region
    $region2: #{forward.1} parent=1 // pred_check
      _
    $region3: #{forward.1} parent=1 // pred_check_branch
      %9 = sbr.rel (0) target = $region5
    $region4: #{forward.1} parent=1 // pred_region
      _
    $region5: #{forward.1} parent=1 // pred_fallthru
      _
    // Predicated region
    $region6: #{forward.1} parent=1 // pred_check
      _
    $region7: #{forward.1} parent=1 // pred_check_branch
      %11 = sbr.rel (0) target = $region9
    $region8: #{forward.1} parent=1 // pred_region
      _
    $region9: #{forward.1} parent=1 // pred_fallthru
      _
    %v12 = vld [vmem:[%s0] sm:$0xff]
    %v13 = vld [vmem:[%s0 + $0x8] sm:$0xff]
    %v14 = vld [vmem:[%s0 + $0x10] sm:$0xff]
    %v15 = vld [vmem:[%s0 + $0x18] sm:$0xff]
    %v16 = vld [vmem:[%s0 + $0x20] sm:$0xff]
    %v17 = vld [vmem:[%s0 + $0x28] sm:$0xff]
    %v18 = vld [vmem:[%s0 + $0x30] sm:$0xf]
    %v19 = vld [vmem:[%s0 + $0x38] sm:$0xf]
    %v20 = vld [vmem:[%s1] sm:$0xff]
    %v21 = vld [vmem:[%s1 + $0x8] sm:$0xff]
    %v22 = vld [vmem:[%s1 + $0x10] sm:$0xff]
    %v23 = vld [vmem:[%s1 + $0x18] sm:$0x1]
    %v24 = vld [vmem:[%s1 + $0x20] sm:$0x1]
    %v25 = vld [vmem:[%s1 + $0x28] sm:$0xff]
    %v26 = vld [vmem:[%s1 + $0x30] sm:$0xff]
    %v27 = vld [vmem:[%s1 + $0x38] sm:$0xff]
    %v28 = vld [vmem:[%s1 + $0x40] sm:$0x1]
    %v29 = vld [vmem:[%s1 + $0x48] sm:$0x1]
    %v30 = vld [vmem:[%s1 + $0x50] sm:$0xff]
    %v31 = vld [vmem:[%s1 + $0x58] sm:$0xff]
    %v32 = vld [vmem:[%s1 + $0x60] sm:$0xff]
    %v33 = vld [vmem:[%s1 + $0x68] sm:$0xff]
    %v34 = vld [vmem:[%s1 + $0x70] sm:$0xff]
    %v35 = vld [vmem:[%s1 + $0x78] sm:$0xff]
    %v36 = vld [vmem:[%s1 + $0x80] sm:$0xff]
    %v37 = vld [vmem:[%s1 + $0x88] sm:$0xff]
    %v38 = vld [vmem:[%s1 + $0x90] sm:$0xff]
    %v39 = vld [vmem:[%s1 + $0x98] sm:$0xff]
    %v40 = vld [vmem:[%s1 + $0xa0] sm:$0xff]
    %v41 = vld [vmem:[%s1 + $0xa8] sm:$0xff]
    %v42 = vld [vmem:[%s1 + $0xb0] sm:$0x1]
    %v43 = vld [vmem:[%s1 + $0xb8] sm:$0x1]
    %v44 = vld [vmem:[%s1 + $0xc0] sm:$0x1]
    %v45 = vld [vmem:[%s1 + $0xc8] sm:$0x1]
    %v46 = vld [vmem:[%s1 + $0xd0] sm:$0x3f]
    %v47 = vld [vmem:[%s1 + $0xd8] sm:$0x1]
    %v48 = vld [vmem:[%s1 + $0xe0] sm:$0xff]
    %v49 = vld [vmem:[%s1 + $0xe8] sm:$0xff]
    %v50 = vld [vmem:[%s1 + $0xf0] sm:$0x1]
    %v51 = vld [vmem:[%s1 + $0xf8] sm:$0xff]
    %v52 = vld [vmem:[%s1 + $0x100] sm:$0xff]
    %v53 = vld [vmem:[%s1 + $0x108] sm:$0xff]
    %v54 = vld [vmem:[%s1 + $0x110] sm:$0xff]
    %v55 = vld [vmem:[%s1 + $0x118] sm:$0x1]
    %v56 = vld [vmem:[%s1 + $0x120] sm:$0xff]
    %v57 = vld [vmem:[%s1 + $0x128] sm:$0xff]
    %v58 = vld [vmem:[%s1 + $0x130] sm:$0x1]
    %v59 = vld [vmem:[%s1 + $0x138] sm:$0xff]
    %v60 = vld [vmem:[%s1 + $0x140] sm:$0x1]
    %vm61 = vcmask 195584
    %v63 = vsel %vm61, %v12, 0
    %v66 = vsel %vm61, %v13, 0
    %v69 = vsel %vm61, %v14, 0
    %v72 = vsel %vm61, %v15, 0
    %v75 = vsel %vm61, %v16, 0
    %v78 = vsel %vm61, %v17, 0
    %80 = vmatpush.msra.mxu0 0.0
    %81 = vmatpush.msra.mxu0 0.0
    %82 = vmatpush.msra.mxu0 0.0
    %83 = vmatpush.msra.mxu0 0.0
    %84 = vmatpush.msra.mxu0 0.0
    %85 = vmatpush.msra.mxu0 0.0
    %86 = vmatpush.msra.mxu0 0.0
    %87 = vmatpush.msra.mxu0 0.0
    %88 = vmatpush.msra.mxu0 0.0
    %89 = vmatpush.msra.mxu0 0.0
    %90 = vmatpush.msra.mxu0 0.0
    %91 = vmatpush.msra.mxu0 0.0
    %92 = vmatpush.msra.mxu0 0.0
    %93 = vmatpush.msra.mxu0 %v22
    %94 = vmatpush.msra.mxu0 %v21
    %95 = vmatpush.msra.mxu0 %v20
    %96 = vmatmul.f32.gmra.mxu0 %v63
    %v97 = vpop.f32.mrf.mxu0
    %v98 = vadd.f32 0.0, %v97
    %99 = vmatmul.f32.gmra.mxu0 %v66
    %v100 = vpop.f32.mrf.mxu0
    %v101 = vadd.f32 0.0, %v100
    %102 = vmatmul.f32.gmra.mxu0 %v69
    %v103 = vpop.f32.mrf.mxu0
    %v104 = vadd.f32 0.0, %v103
    %105 = vmatmul.f32.gmra.mxu0 %v72
    %v106 = vpop.f32.mrf.mxu0
    %v107 = vadd.f32 0.0, %v106
    %108 = vmatmul.f32.gmra.mxu0 %v75
    %v109 = vpop.f32.mrf.mxu0
    %v110 = vadd.f32 0.0, %v109
    %111 = vmatmul.f32.gmra.mxu0 %v78
    %v112 = vpop.f32.mrf.mxu0
    %v113 = vadd.f32 0.0, %v112
    %114 = vdwg.mxu0
    %v115 = vperm.slane %v23, 0
    %v116 = vmul.f32 %v98, %v115
    %v117 = vmul.f32 %v101, %v115
    %v118 = vmul.f32 %v104, %v115
    %v119 = vmul.f32 %v107, %v115
    %v120 = vmul.f32 %v110, %v115
    %v121 = vmul.f32 %v113, %v115
    %v122 = vperm.slane %v24, 0
    %v123 = vadd.f32 %v116, %v122
    %v124 = vadd.f32 %v117, %v122
    %v125 = vadd.f32 %v118, %v122
    %v126 = vadd.f32 %v119, %v122
    %v127 = vadd.f32 %v120, %v122
    %v128 = vadd.f32 %v121, %v122
    %v129 = vmax.f32 %v123, 0.0
    %v130 = vmax.f32 %v124, 0.0
    %v131 = vmax.f32 %v125, 0.0
    %v132 = vmax.f32 %v126, 0.0
    %v133 = vmax.f32 %v127, 0.0
    %v134 = vmax.f32 %v128, 0.0
    %v135 = vmax.f32 %v129, %v132
    %v136 = vmax.f32 %v130, %v133
    %v137 = vmax.f32 %v131, %v134
    %vm140 = vcmask 1043456
    %v141 = vrot.slane %v135, 4
    %v142 = vrot.slane %v136, 4
    %v143 = vsel %vm140, %v141, %v142
    %144 = vrot.lane.b32.xlu0 %v143, 8
    %v145 = vpop.permute.xlu0 %144
    %146 = vrot.lane.b32.xlu0 %v142, 8
    %v147 = vpop.permute.xlu0 %146
    %151 = vrot.lane.b32.xlu0 %v136, 16
    %v152 = vpop.permute.xlu0 %151
    %153 = vrot.lane.b32.xlu0 %v137, 16
    %v154 = vpop.permute.xlu0 %153
    %vm157 = vcmask 64512
    %v158 = vsel %vm157, %v135, %v145
    %v159 = vsel %vm157, %v136, %v147
    %vm160 = vcmask 130048
    %v161 = vsel %vm160, %v158, %v152
    %v162 = vsel %vm160, %v159, %v154
    %v164 = vsel %vm61, %v161, 0
    %v167 = vsel %vm61, %v162, 0
    %169 = vmatpush.msra.mxu0 0.0
    %170 = vmatpush.msra.mxu0 0.0
    %171 = vmatpush.msra.mxu0 0.0
    %172 = vmatpush.msra.mxu0 0.0
    %173 = vmatpush.msra.mxu0 0.0
    %174 = vmatpush.msra.mxu0 0.0
    %175 = vmatpush.msra.mxu0 0.0
    %176 = vmatpush.msra.mxu0 0.0
    %177 = vmatpush.msra.mxu0 0.0
    %178 = vmatpush.msra.mxu0 0.0
    %179 = vmatpush.msra.mxu0 0.0
    %180 = vmatpush.msra.mxu0 0.0
    %181 = vmatpush.msra.mxu0 0.0
    %182 = vmatpush.msra.mxu0 %v27
    %183 = vmatpush.msra.mxu0 %v26
    %184 = vmatpush.msra.mxu0 %v25
    %185 = vmatmul.f32.gmra.mxu0 %v164
    %v186 = vpop.f32.mrf.mxu0
    %v187 = vadd.f32 0.0, %v186
    %188 = vmatmul.f32.gmra.mxu0 %v167
    %v189 = vpop.f32.mrf.mxu0
    %190 = vdwg.mxu0
    %v191 = vperm.slane %v28, 0
    %v192 = vmul.f32 %v187, %v191
    %v193 = vperm.slane %v29, 0
    %v194 = vadd.f32 %v192, %v193
    %v195 = vmax.f32 %v194, 0.0
    %v197 = vrot.slane %v195, 4
    %v199 = vmax.f32 %v195, %v197
    %v200 = vperm.slane %v42, 0
    %v202 = vsel %vm157, %v199, 0
    %204 = vmatpush.msra.mxu0 0.0
    %205 = vmatpush.msra.mxu0 0.0
    %206 = vmatpush.msra.mxu0 0.0
    %207 = vmatpush.msra.mxu0 0.0
    %208 = vmatpush.msra.mxu0 0.0
    %209 = vmatpush.msra.mxu0 0.0
    %210 = vmatpush.msra.mxu0 0.0
    %211 = vmatpush.msra.mxu0 0.0
    %212 = vmatpush.msra.mxu0 0.0
    %213 = vmatpush.msra.mxu0 0.0
    %214 = vmatpush.msra.mxu0 0.0
    %215 = vmatpush.msra.mxu0 0.0
    %216 = vmatpush.msra.mxu0 0.0
    %217 = vmatpush.msra.mxu0 0.0
    %218 = vmatpush.msra.mxu0 0.0
    %219 = vmatpush.msra.mxu0 %v30
    %220 = vmatmul.f32.gmra.mxu0 %v202
    %v221 = vpop.f32.mrf.mxu0
    %v222 = vadd.f32 %v200, %v221
    %223 = vdwg.mxu0
    %v224 = vperm.slane %v43, 0
    %225 = vmatpush.msra.mxu0 0.0
    %226 = vmatpush.msra.mxu0 0.0
    %227 = vmatpush.msra.mxu0 0.0
    %228 = vmatpush.msra.mxu0 0.0
    %229 = vmatpush.msra.mxu0 0.0
    %230 = vmatpush.msra.mxu0 0.0
    %231 = vmatpush.msra.mxu0 0.0
    %232 = vmatpush.msra.mxu0 0.0
    %233 = vmatpush.msra.mxu0 0.0
    %234 = vmatpush.msra.mxu0 0.0
    %235 = vmatpush.msra.mxu0 0.0
    %236 = vmatpush.msra.mxu0 0.0
    %237 = vmatpush.msra.mxu0 0.0
    %238 = vmatpush.msra.mxu0 0.0
    %239 = vmatpush.msra.mxu0 0.0
    %240 = vmatpush.msra.mxu0 %v31
    %241 = vmatmul.f32.gmra.mxu0 %v202
    %v242 = vpop.f32.mrf.mxu0
    %v243 = vadd.f32 %v224, %v242
    %244 = vdwg.mxu0
    %v245 = vperm.slane %v44, 0
    %246 = vmatpush.msra.mxu0 0.0
    %247 = vmatpush.msra.mxu0 0.0
    %248 = vmatpush.msra.mxu0 0.0
    %249 = vmatpush.msra.mxu0 0.0
    %250 = vmatpush.msra.mxu0 0.0
    %251 = vmatpush.msra.mxu0 0.0
    %252 = vmatpush.msra.mxu0 0.0
    %253 = vmatpush.msra.mxu0 0.0
    %254 = vmatpush.msra.mxu0 0.0
    %255 = vmatpush.msra.mxu0 0.0
    %256 = vmatpush.msra.mxu0 0.0
    %257 = vmatpush.msra.mxu0 0.0
    %258 = vmatpush.msra.mxu0 0.0
    %259 = vmatpush.msra.mxu0 0.0
    %260 = vmatpush.msra.mxu0 0.0
    %261 = vmatpush.msra.mxu0 %v32
    %262 = vmatmul.f32.gmra.mxu0 %v202
    %v263 = vpop.f32.mrf.mxu0
    %v264 = vadd.f32 %v245, %v263
    %265 = vdwg.mxu0
    %v266 = vperm.slane %v45, 0
    %267 = vmatpush.msra.mxu0 0.0
    %268 = vmatpush.msra.mxu0 0.0
    %269 = vmatpush.msra.mxu0 0.0
    %270 = vmatpush.msra.mxu0 0.0
    %271 = vmatpush.msra.mxu0 0.0
    %272 = vmatpush.msra.mxu0 0.0
    %273 = vmatpush.msra.mxu0 0.0
    %274 = vmatpush.msra.mxu0 0.0
    %275 = vmatpush.msra.mxu0 0.0
    %276 = vmatpush.msra.mxu0 0.0
    %277 = vmatpush.msra.mxu0 0.0
    %278 = vmatpush.msra.mxu0 0.0
    %279 = vmatpush.msra.mxu0 0.0
    %280 = vmatpush.msra.mxu0 0.0
    %281 = vmatpush.msra.mxu0 0.0
    %282 = vmatpush.msra.mxu0 %v33
    %283 = vmatmul.f32.gmra.mxu0 %v202
    %v284 = vpop.f32.mrf.mxu0
    %v285 = vadd.f32 %v266, %v284
    %286 = vdwg.mxu0
    %v288 = vsel %vm160, 0.0, 0
    %290 = vmatpush.msra.mxu0 0.0
    %291 = vmatpush.msra.mxu0 0.0
    %292 = vmatpush.msra.mxu0 0.0
    %293 = vmatpush.msra.mxu0 0.0
    %294 = vmatpush.msra.mxu0 0.0
    %295 = vmatpush.msra.mxu0 0.0
    %296 = vmatpush.msra.mxu0 0.0
    %297 = vmatpush.msra.mxu0 0.0
    %298 = vmatpush.msra.mxu0 0.0
    %299 = vmatpush.msra.mxu0 0.0
    %300 = vmatpush.msra.mxu0 0.0
    %301 = vmatpush.msra.mxu0 0.0
    %302 = vmatpush.msra.mxu0 0.0
    %303 = vmatpush.msra.mxu0 0.0
    %304 = vmatpush.msra.mxu0 %v35
    %305 = vmatpush.msra.mxu0 %v34
    %306 = vmatmul.f32.gmra.mxu0 %v288
    %v307 = vpop.f32.mrf.mxu0
    %v308 = vadd.f32 0.0, %v307
    %309 = vdwg.mxu0
    %v310 = vadd.f32 %v222, %v308
    %v311 = vxor.u32 %v310, 2147483648
    %v312 = vmul.f32 %v311, 1.442695
    %v313 = vpow.pop %v312
    %v314 = vadd.f32 %v313, 1.0
    %v315 = vrcp.pop %v314
    %v316 = vmul.f32 %v314, %v315
    %v317 = vsub.f32 1.0, %v316
    %v318 = vmul.f32 %v315, %v317
    %v319 = vadd.f32 %v315, %v318
    %vm320 = vweird.f32 %v314
    %vm321 = vweird.f32 %v315
    %vm322 = vmor %vm320, %vm321
    %v323 = vsel %vm322, %v315, %v319
    %v324 = vand.u32 2147483647, %v314
    %vm325 = vcmp.eq.f32.partialorder %v324, 8.507059e+37
    %v326 = vand.u32 %v314, 2147483648
    %v327 = vor.u32 1.1754944e-38, %v326
    %v328 = vsel %vm325, %v327, %v323
    %v329 = vmul.f32 1.0, %v328
    %330 = vmatpush.msra.mxu0 0.0
    %331 = vmatpush.msra.mxu0 0.0
    %332 = vmatpush.msra.mxu0 0.0
    %333 = vmatpush.msra.mxu0 0.0
    %334 = vmatpush.msra.mxu0 0.0
    %335 = vmatpush.msra.mxu0 0.0
    %336 = vmatpush.msra.mxu0 0.0
    %337 = vmatpush.msra.mxu0 0.0
    %338 = vmatpush.msra.mxu0 0.0
    %339 = vmatpush.msra.mxu0 0.0
    %340 = vmatpush.msra.mxu0 0.0
    %341 = vmatpush.msra.mxu0 0.0
    %342 = vmatpush.msra.mxu0 0.0
    %343 = vmatpush.msra.mxu0 0.0
    %344 = vmatpush.msra.mxu0 %v37
    %345 = vmatpush.msra.mxu0 %v36
    %346 = vmatmul.f32.gmra.mxu0 %v288
    %v347 = vpop.f32.mrf.mxu0
    %v348 = vadd.f32 0.0, %v347
    %349 = vdwg.mxu0
    %v350 = vadd.f32 %v243, %v348
    %v351 = vxor.u32 %v350, 2147483648
    %v352 = vmul.f32 %v351, 1.442695
    %v353 = vpow.pop %v352
    %v354 = vadd.f32 %v353, 1.0
    %v355 = vrcp.pop %v354
    %v356 = vmul.f32 %v354, %v355
    %v357 = vsub.f32 1.0, %v356
    %v358 = vmul.f32 %v355, %v357
    %v359 = vadd.f32 %v355, %v358
    %vm360 = vweird.f32 %v354
    %vm361 = vweird.f32 %v355
    %vm362 = vmor %vm360, %vm361
    %v363 = vsel %vm362, %v355, %v359
    %v364 = vand.u32 2147483647, %v354
    %vm365 = vcmp.eq.f32.partialorder %v364, 8.507059e+37
    %v366 = vand.u32 %v354, 2147483648
    %v367 = vor.u32 1.1754944e-38, %v366
    %v368 = vsel %vm365, %v367, %v363
    %v369 = vmul.f32 1.0, %v368
    %370 = vmatpush.msra.mxu0 0.0
    %371 = vmatpush.msra.mxu0 0.0
    %372 = vmatpush.msra.mxu0 0.0
    %373 = vmatpush.msra.mxu0 0.0
    %374 = vmatpush.msra.mxu0 0.0
    %375 = vmatpush.msra.mxu0 0.0
    %376 = vmatpush.msra.mxu0 0.0
    %377 = vmatpush.msra.mxu0 0.0
    %378 = vmatpush.msra.mxu0 0.0
    %379 = vmatpush.msra.mxu0 0.0
    %380 = vmatpush.msra.mxu0 0.0
    %381 = vmatpush.msra.mxu0 0.0
    %382 = vmatpush.msra.mxu0 0.0
    %383 = vmatpush.msra.mxu0 0.0
    %384 = vmatpush.msra.mxu0 %v39
    %385 = vmatpush.msra.mxu0 %v38
    %386 = vmatmul.f32.gmra.mxu0 %v288
    %v387 = vpop.f32.mrf.mxu0
    %v388 = vadd.f32 0.0, %v387
    %389 = vdwg.mxu0
    %v390 = vadd.f32 %v264, %v388
    %v391 = vxor.u32 %v390, 2147483648
    %v392 = vmul.f32 %v391, 1.442695
    %v393 = vpow.pop %v392
    %v394 = vadd.f32 %v393, 1.0
    %v395 = vrcp.pop %v394
    %v396 = vmul.f32 %v394, %v395
    %v397 = vsub.f32 1.0, %v396
    %v398 = vmul.f32 %v395, %v397
    %v399 = vadd.f32 %v395, %v398
    %vm400 = vweird.f32 %v394
    %vm401 = vweird.f32 %v395
    %vm402 = vmor %vm400, %vm401
    %v403 = vsel %vm402, %v395, %v399
    %v404 = vand.u32 2147483647, %v394
    %vm405 = vcmp.eq.f32.partialorder %v404, 8.507059e+37
    %v406 = vand.u32 %v394, 2147483648
    %v407 = vor.u32 1.1754944e-38, %v406
    %v408 = vsel %vm405, %v407, %v403
    %v409 = vmul.f32 1.0, %v408
    %410 = vmatpush.msra.mxu0 0.0
    %411 = vmatpush.msra.mxu0 0.0
    %412 = vmatpush.msra.mxu0 0.0
    %413 = vmatpush.msra.mxu0 0.0
    %414 = vmatpush.msra.mxu0 0.0
    %415 = vmatpush.msra.mxu0 0.0
    %416 = vmatpush.msra.mxu0 0.0
    %417 = vmatpush.msra.mxu0 0.0
    %418 = vmatpush.msra.mxu0 0.0
    %419 = vmatpush.msra.mxu0 0.0
    %420 = vmatpush.msra.mxu0 0.0
    %421 = vmatpush.msra.mxu0 0.0
    %422 = vmatpush.msra.mxu0 0.0
    %423 = vmatpush.msra.mxu0 0.0
    %424 = vmatpush.msra.mxu0 %v41
    %425 = vmatpush.msra.mxu0 %v40
    %426 = vmatmul.f32.gmra.mxu0 %v288
    %v427 = vpop.f32.mrf.mxu0
    %v428 = vadd.f32 0.0, %v427
    %429 = vdwg.mxu0
    %v430 = vadd.f32 %v285, %v428
    %v431 = vtanh.pop %v430
    %v432 = vmul.f32 %v369, 0.0
    %v433 = vmul.f32 %v329, %v431
    %v434 = vadd.f32 %v432, %v433
    %v435 = vtanh.pop %v434
    %v436 = vmul.f32 %v409, %v435
    %v437 = vmax.f32 %v436, 0.0
    %v439 = vsel %vm160, %v436, 0
    %441 = vmatpush.msra.mxu0 0.0
    %442 = vmatpush.msra.mxu0 0.0
    %443 = vmatpush.msra.mxu0 0.0
    %444 = vmatpush.msra.mxu0 0.0
    %445 = vmatpush.msra.mxu0 0.0
    %446 = vmatpush.msra.mxu0 0.0
    %447 = vmatpush.msra.mxu0 0.0
    %448 = vmatpush.msra.mxu0 0.0
    %449 = vmatpush.msra.mxu0 0.0
    %450 = vmatpush.msra.mxu0 0.0
    %451 = vmatpush.msra.mxu0 0.0
    %452 = vmatpush.msra.mxu0 0.0
    %453 = vmatpush.msra.mxu0 0.0
    %454 = vmatpush.msra.mxu0 0.0
    %455 = vmatpush.msra.mxu0 %v35
    %456 = vmatpush.msra.mxu0 %v34
    %457 = vmatmul.f32.gmra.mxu0 %v439
    %v458 = vpop.f32.mrf.mxu0
    %v459 = vadd.f32 0.0, %v458
    %460 = vdwg.mxu0
    %v462 = vrot.slane %v459, 7
    %v464 = vadd.f32 %v222, %v462
    %v465 = vxor.u32 %v464, 2147483648
    %v466 = vmul.f32 %v465, 1.442695
    %v467 = vpow.pop %v466
    %v468 = vadd.f32 %v467, 1.0
    %v469 = vrcp.pop %v468
    %v470 = vmul.f32 %v468, %v469
    %v471 = vsub.f32 1.0, %v470
    %v472 = vmul.f32 %v469, %v471
    %v473 = vadd.f32 %v469, %v472
    %vm474 = vweird.f32 %v468
    %vm475 = vweird.f32 %v469
    %vm476 = vmor %vm474, %vm475
    %v477 = vsel %vm476, %v469, %v473
    %v478 = vand.u32 2147483647, %v468
    %vm479 = vcmp.eq.f32.partialorder %v478, 8.507059e+37
    %v480 = vand.u32 %v468, 2147483648
    %v481 = vor.u32 1.1754944e-38, %v480
    %v482 = vsel %vm479, %v481, %v477
    %v483 = vmul.f32 1.0, %v482
    %484 = vmatpush.msra.mxu0 0.0
    %485 = vmatpush.msra.mxu0 0.0
    %486 = vmatpush.msra.mxu0 0.0
    %487 = vmatpush.msra.mxu0 0.0
    %488 = vmatpush.msra.mxu0 0.0
    %489 = vmatpush.msra.mxu0 0.0
    %490 = vmatpush.msra.mxu0 0.0
    %491 = vmatpush.msra.mxu0 0.0
    %492 = vmatpush.msra.mxu0 0.0
    %493 = vmatpush.msra.mxu0 0.0
    %494 = vmatpush.msra.mxu0 0.0
    %495 = vmatpush.msra.mxu0 0.0
    %496 = vmatpush.msra.mxu0 0.0
    %497 = vmatpush.msra.mxu0 0.0
    %498 = vmatpush.msra.mxu0 %v37
    %499 = vmatpush.msra.mxu0 %v36
    %500 = vmatmul.f32.gmra.mxu0 %v439
    %v501 = vpop.f32.mrf.mxu0
    %v502 = vadd.f32 0.0, %v501
    %503 = vdwg.mxu0
    %v505 = vrot.slane %v502, 7
    %v507 = vadd.f32 %v243, %v505
    %v508 = vxor.u32 %v507, 2147483648
    %v509 = vmul.f32 %v508, 1.442695
    %v510 = vpow.pop %v509
    %v511 = vadd.f32 %v510, 1.0
    %v512 = vrcp.pop %v511
    %v513 = vmul.f32 %v511, %v512
    %v514 = vsub.f32 1.0, %v513
    %v515 = vmul.f32 %v512, %v514
    %v516 = vadd.f32 %v512, %v515
    %vm517 = vweird.f32 %v511
    %vm518 = vweird.f32 %v512
    %vm519 = vmor %vm517, %vm518
    %v520 = vsel %vm519, %v512, %v516
    %v521 = vand.u32 2147483647, %v511
    %vm522 = vcmp.eq.f32.partialorder %v521, 8.507059e+37
    %v523 = vand.u32 %v511, 2147483648
    %v524 = vor.u32 1.1754944e-38, %v523
    %v525 = vsel %vm522, %v524, %v520
    %v526 = vmul.f32 1.0, %v525
    %527 = vmatpush.msra.mxu0 0.0
    %528 = vmatpush.msra.mxu0 0.0
    %529 = vmatpush.msra.mxu0 0.0
    %530 = vmatpush.msra.mxu0 0.0
    %531 = vmatpush.msra.mxu0 0.0
    %532 = vmatpush.msra.mxu0 0.0
    %533 = vmatpush.msra.mxu0 0.0
    %534 = vmatpush.msra.mxu0 0.0
    %535 = vmatpush.msra.mxu0 0.0
    %536 = vmatpush.msra.mxu0 0.0
    %537 = vmatpush.msra.mxu0 0.0
    %538 = vmatpush.msra.mxu0 0.0
    %539 = vmatpush.msra.mxu0 0.0
    %540 = vmatpush.msra.mxu0 0.0
    %541 = vmatpush.msra.mxu0 %v39
    %542 = vmatpush.msra.mxu0 %v38
    %543 = vmatmul.f32.gmra.mxu0 %v439
    %v544 = vpop.f32.mrf.mxu0
    %v545 = vadd.f32 0.0, %v544
    %546 = vdwg.mxu0
    %v548 = vrot.slane %v545, 7
    %v550 = vadd.f32 %v264, %v548
    %v551 = vxor.u32 %v550, 2147483648
    %v552 = vmul.f32 %v551, 1.442695
    %v553 = vpow.pop %v552
    %v554 = vadd.f32 %v553, 1.0
    %v555 = vrcp.pop %v554
    %v556 = vmul.f32 %v554, %v555
    %v557 = vsub.f32 1.0, %v556
    %v558 = vmul.f32 %v555, %v557
    %v559 = vadd.f32 %v555, %v558
    %vm560 = vweird.f32 %v554
    %vm561 = vweird.f32 %v555
    %vm562 = vmor %vm560, %vm561
    %v563 = vsel %vm562, %v555, %v559
    %v564 = vand.u32 2147483647, %v554
    %vm565 = vcmp.eq.f32.partialorder %v564, 8.507059e+37
    %v566 = vand.u32 %v554, 2147483648
    %v567 = vor.u32 1.1754944e-38, %v566
    %v568 = vsel %vm565, %v567, %v563
    %v569 = vmul.f32 1.0, %v568
    %570 = vmatpush.msra.mxu0 0.0
    %571 = vmatpush.msra.mxu0 0.0
    %572 = vmatpush.msra.mxu0 0.0
    %573 = vmatpush.msra.mxu0 0.0
    %574 = vmatpush.msra.mxu0 0.0
    %575 = vmatpush.msra.mxu0 0.0
    %576 = vmatpush.msra.mxu0 0.0
    %577 = vmatpush.msra.mxu0 0.0
    %578 = vmatpush.msra.mxu0 0.0
    %579 = vmatpush.msra.mxu0 0.0
    %580 = vmatpush.msra.mxu0 0.0
    %581 = vmatpush.msra.mxu0 0.0
    %582 = vmatpush.msra.mxu0 0.0
    %583 = vmatpush.msra.mxu0 0.0
    %584 = vmatpush.msra.mxu0 %v41
    %585 = vmatpush.msra.mxu0 %v40
    %586 = vmatmul.f32.gmra.mxu0 %v439
    %v587 = vpop.f32.mrf.mxu0
    %v588 = vadd.f32 0.0, %v587
    %589 = vdwg.mxu0
    %v591 = vrot.slane %v588, 7
    %v593 = vadd.f32 %v285, %v591
    %v594 = vtanh.pop %v593
    %v596 = vrot.slane %v434, 7
    %v598 = vmul.f32 %v526, %v596
    %v599 = vmul.f32 %v483, %v594
    %v600 = vadd.f32 %v598, %v599
    %v601 = vtanh.pop %v600
    %v602 = vmul.f32 %v569, %v601
    %v603 = vmax.f32 %v602, 0.0
    %v605 = vrot.slane %v602, 1
    %v606 = vsel %vm160, %v605, 0
    %608 = vmatpush.msra.mxu0 0.0
    %609 = vmatpush.msra.mxu0 0.0
    %610 = vmatpush.msra.mxu0 0.0
    %611 = vmatpush.msra.mxu0 0.0
    %612 = vmatpush.msra.mxu0 0.0
    %613 = vmatpush.msra.mxu0 0.0
    %614 = vmatpush.msra.mxu0 0.0
    %615 = vmatpush.msra.mxu0 0.0
    %616 = vmatpush.msra.mxu0 0.0
    %617 = vmatpush.msra.mxu0 0.0
    %618 = vmatpush.msra.mxu0 0.0
    %619 = vmatpush.msra.mxu0 0.0
    %620 = vmatpush.msra.mxu0 0.0
    %621 = vmatpush.msra.mxu0 0.0
    %622 = vmatpush.msra.mxu0 %v35
    %623 = vmatpush.msra.mxu0 %v34
    %624 = vmatmul.f32.gmra.mxu0 %v606
    %v625 = vpop.f32.mrf.mxu0
    %v626 = vadd.f32 0.0, %v625
    %627 = vdwg.mxu0
    %v629 = vrot.slane %v626, 6
    %v631 = vadd.f32 %v222, %v629
    %v632 = vxor.u32 %v631, 2147483648
    %v633 = vmul.f32 %v632, 1.442695
    %v634 = vpow.pop %v633
    %v635 = vadd.f32 %v634, 1.0
    %v636 = vrcp.pop %v635
    %v637 = vmul.f32 %v635, %v636
    %v638 = vsub.f32 1.0, %v637
    %v639 = vmul.f32 %v636, %v638
    %v640 = vadd.f32 %v636, %v639
    %vm641 = vweird.f32 %v635
    %vm642 = vweird.f32 %v636
    %vm643 = vmor %vm641, %vm642
    %v644 = vsel %vm643, %v636, %v640
    %v645 = vand.u32 2147483647, %v635
    %vm646 = vcmp.eq.f32.partialorder %v645, 8.507059e+37
    %v647 = vand.u32 %v635, 2147483648
    %v648 = vor.u32 1.1754944e-38, %v647
    %v649 = vsel %vm646, %v648, %v644
    %v650 = vmul.f32 1.0, %v649
    %651 = vmatpush.msra.mxu0 0.0
    %652 = vmatpush.msra.mxu0 0.0
    %653 = vmatpush.msra.mxu0 0.0
    %654 = vmatpush.msra.mxu0 0.0
    %655 = vmatpush.msra.mxu0 0.0
    %656 = vmatpush.msra.mxu0 0.0
    %657 = vmatpush.msra.mxu0 0.0
    %658 = vmatpush.msra.mxu0 0.0
    %659 = vmatpush.msra.mxu0 0.0
    %660 = vmatpush.msra.mxu0 0.0
    %661 = vmatpush.msra.mxu0 0.0
    %662 = vmatpush.msra.mxu0 0.0
    %663 = vmatpush.msra.mxu0 0.0
    %664 = vmatpush.msra.mxu0 0.0
    %665 = vmatpush.msra.mxu0 %v37
    %666 = vmatpush.msra.mxu0 %v36
    %667 = vmatmul.f32.gmra.mxu0 %v606
    %v668 = vpop.f32.mrf.mxu0
    %v669 = vadd.f32 0.0, %v668
    %670 = vdwg.mxu0
    %v672 = vrot.slane %v669, 6
    %v674 = vadd.f32 %v243, %v672
    %v675 = vxor.u32 %v674, 2147483648
    %v676 = vmul.f32 %v675, 1.442695
    %v677 = vpow.pop %v676
    %v678 = vadd.f32 %v677, 1.0
    %v679 = vrcp.pop %v678
    %v680 = vmul.f32 %v678, %v679
    %v681 = vsub.f32 1.0, %v680
    %v682 = vmul.f32 %v679, %v681
    %v683 = vadd.f32 %v679, %v682
    %vm684 = vweird.f32 %v678
    %vm685 = vweird.f32 %v679
    %vm686 = vmor %vm684, %vm685
    %v687 = vsel %vm686, %v679, %v683
    %v688 = vand.u32 2147483647, %v678
    %vm689 = vcmp.eq.f32.partialorder %v688, 8.507059e+37
    %v690 = vand.u32 %v678, 2147483648
    %v691 = vor.u32 1.1754944e-38, %v690
    %v692 = vsel %vm689, %v691, %v687
    %v693 = vmul.f32 1.0, %v692
    %694 = vmatpush.msra.mxu0 0.0
    %695 = vmatpush.msra.mxu0 0.0
    %696 = vmatpush.msra.mxu0 0.0
    %697 = vmatpush.msra.mxu0 0.0
    %698 = vmatpush.msra.mxu0 0.0
    %699 = vmatpush.msra.mxu0 0.0
    %700 = vmatpush.msra.mxu0 0.0
    %701 = vmatpush.msra.mxu0 0.0
    %702 = vmatpush.msra.mxu0 0.0
    %703 = vmatpush.msra.mxu0 0.0
    %704 = vmatpush.msra.mxu0 0.0
    %705 = vmatpush.msra.mxu0 0.0
    %706 = vmatpush.msra.mxu0 0.0
    %707 = vmatpush.msra.mxu0 0.0
    %708 = vmatpush.msra.mxu0 %v39
    %709 = vmatpush.msra.mxu0 %v38
    %710 = vmatmul.f32.gmra.mxu0 %v606
    %v711 = vpop.f32.mrf.mxu0
    %v712 = vadd.f32 0.0, %v711
    %713 = vdwg.mxu0
    %v715 = vrot.slane %v712, 6
    %v717 = vadd.f32 %v264, %v715
    %v718 = vxor.u32 %v717, 2147483648
    %v719 = vmul.f32 %v718, 1.442695
    %v720 = vpow.pop %v719
    %v721 = vadd.f32 %v720, 1.0
    %v722 = vrcp.pop %v721
    %v723 = vmul.f32 %v721, %v722
    %v724 = vsub.f32 1.0, %v723
    %v725 = vmul.f32 %v722, %v724
    %v726 = vadd.f32 %v722, %v725
    %vm727 = vweird.f32 %v721
    %vm728 = vweird.f32 %v722
    %vm729 = vmor %vm727, %vm728
    %v730 = vsel %vm729, %v722, %v726
    %v731 = vand.u32 2147483647, %v721
    %vm732 = vcmp.eq.f32.partialorder %v731, 8.507059e+37
    %v733 = vand.u32 %v721, 2147483648
    %v734 = vor.u32 1.1754944e-38, %v733
    %v735 = vsel %vm732, %v734, %v730
    %v736 = vmul.f32 1.0, %v735
    %737 = vmatpush.msra.mxu0 0.0
    %738 = vmatpush.msra.mxu0 0.0
    %739 = vmatpush.msra.mxu0 0.0
    %740 = vmatpush.msra.mxu0 0.0
    %741 = vmatpush.msra.mxu0 0.0
    %742 = vmatpush.msra.mxu0 0.0
    %743 = vmatpush.msra.mxu0 0.0
    %744 = vmatpush.msra.mxu0 0.0
    %745 = vmatpush.msra.mxu0 0.0
    %746 = vmatpush.msra.mxu0 0.0
    %747 = vmatpush.msra.mxu0 0.0
    %748 = vmatpush.msra.mxu0 0.0
    %749 = vmatpush.msra.mxu0 0.0
    %750 = vmatpush.msra.mxu0 0.0
    %751 = vmatpush.msra.mxu0 %v41
    %752 = vmatpush.msra.mxu0 %v40
    %753 = vmatmul.f32.gmra.mxu0 %v606
    %v754 = vpop.f32.mrf.mxu0
    %v755 = vadd.f32 0.0, %v754
    %756 = vdwg.mxu0
    %v758 = vrot.slane %v755, 6
    %v760 = vadd.f32 %v285, %v758
    %v761 = vtanh.pop %v760
    %v763 = vrot.slane %v600, 7
    %v765 = vmul.f32 %v693, %v763
    %v766 = vmul.f32 %v650, %v761
    %v767 = vadd.f32 %v765, %v766
    %v768 = vtanh.pop %v767
    %v769 = vmul.f32 %v736, %v768
    %v770 = vmax.f32 %v769, 0.0
    %v772 = vrot.slane %v769, 2
    %v773 = vsel %vm160, %v772, 0
    %775 = vmatpush.msra.mxu0 0.0
    %776 = vmatpush.msra.mxu0 0.0
    %777 = vmatpush.msra.mxu0 0.0
    %778 = vmatpush.msra.mxu0 0.0
    %779 = vmatpush.msra.mxu0 0.0
    %780 = vmatpush.msra.mxu0 0.0
    %781 = vmatpush.msra.mxu0 0.0
    %782 = vmatpush.msra.mxu0 0.0
    %783 = vmatpush.msra.mxu0 0.0
    %784 = vmatpush.msra.mxu0 0.0
    %785 = vmatpush.msra.mxu0 0.0
    %786 = vmatpush.msra.mxu0 0.0
    %787 = vmatpush.msra.mxu0 0.0
    %788 = vmatpush.msra.mxu0 0.0
    %789 = vmatpush.msra.mxu0 %v35
    %790 = vmatpush.msra.mxu0 %v34
    %791 = vmatmul.f32.gmra.mxu0 %v773
    %v792 = vpop.f32.mrf.mxu0
    %v793 = vadd.f32 0.0, %v792
    %794 = vdwg.mxu0
    %v796 = vrot.slane %v793, 5
    %v798 = vadd.f32 %v222, %v796
    %v799 = vxor.u32 %v798, 2147483648
    %v800 = vmul.f32 %v799, 1.442695
    %v801 = vpow.pop %v800
    %v802 = vadd.f32 %v801, 1.0
    %v803 = vrcp.pop %v802
    %v804 = vmul.f32 %v802, %v803
    %v805 = vsub.f32 1.0, %v804
    %v806 = vmul.f32 %v803, %v805
    %v807 = vadd.f32 %v803, %v806
    %vm808 = vweird.f32 %v802
    %vm809 = vweird.f32 %v803
    %vm810 = vmor %vm808, %vm809
    %v811 = vsel %vm810, %v803, %v807
    %v812 = vand.u32 2147483647, %v802
    %vm813 = vcmp.eq.f32.partialorder %v812, 8.507059e+37
    %v814 = vand.u32 %v802, 2147483648
    %v815 = vor.u32 1.1754944e-38, %v814
    %v816 = vsel %vm813, %v815, %v811
    %v817 = vmul.f32 1.0, %v816
    %818 = vmatpush.msra.mxu0 0.0
    %819 = vmatpush.msra.mxu0 0.0
    %820 = vmatpush.msra.mxu0 0.0
    %821 = vmatpush.msra.mxu0 0.0
    %822 = vmatpush.msra.mxu0 0.0
    %823 = vmatpush.msra.mxu0 0.0
    %824 = vmatpush.msra.mxu0 0.0
    %825 = vmatpush.msra.mxu0 0.0
    %826 = vmatpush.msra.mxu0 0.0
    %827 = vmatpush.msra.mxu0 0.0
    %828 = vmatpush.msra.mxu0 0.0
    %829 = vmatpush.msra.mxu0 0.0
    %830 = vmatpush.msra.mxu0 0.0
    %831 = vmatpush.msra.mxu0 0.0
    %832 = vmatpush.msra.mxu0 %v37
    %833 = vmatpush.msra.mxu0 %v36
    %834 = vmatmul.f32.gmra.mxu0 %v773
    %v835 = vpop.f32.mrf.mxu0
    %v836 = vadd.f32 0.0, %v835
    %837 = vdwg.mxu0
    %v839 = vrot.slane %v836, 5
    %v841 = vadd.f32 %v243, %v839
    %v842 = vxor.u32 %v841, 2147483648
    %v843 = vmul.f32 %v842, 1.442695
    %v844 = vpow.pop %v843
    %v845 = vadd.f32 %v844, 1.0
    %v846 = vrcp.pop %v845
    %v847 = vmul.f32 %v845, %v846
    %v848 = vsub.f32 1.0, %v847
    %v849 = vmul.f32 %v846, %v848
    %v850 = vadd.f32 %v846, %v849
    %vm851 = vweird.f32 %v845
    %vm852 = vweird.f32 %v846
    %vm853 = vmor %vm851, %vm852
    %v854 = vsel %vm853, %v846, %v850
    %v855 = vand.u32 2147483647, %v845
    %vm856 = vcmp.eq.f32.partialorder %v855, 8.507059e+37
    %v857 = vand.u32 %v845, 2147483648
    %v858 = vor.u32 1.1754944e-38, %v857
    %v859 = vsel %vm856, %v858, %v854
    %v860 = vmul.f32 1.0, %v859
    %861 = vmatpush.msra.mxu0 0.0
    %862 = vmatpush.msra.mxu0 0.0
    %863 = vmatpush.msra.mxu0 0.0
    %864 = vmatpush.msra.mxu0 0.0
    %865 = vmatpush.msra.mxu0 0.0
    %866 = vmatpush.msra.mxu0 0.0
    %867 = vmatpush.msra.mxu0 0.0
    %868 = vmatpush.msra.mxu0 0.0
    %869 = vmatpush.msra.mxu0 0.0
    %870 = vmatpush.msra.mxu0 0.0
    %871 = vmatpush.msra.mxu0 0.0
    %872 = vmatpush.msra.mxu0 0.0
    %873 = vmatpush.msra.mxu0 0.0
    %874 = vmatpush.msra.mxu0 0.0
    %875 = vmatpush.msra.mxu0 %v39
    %876 = vmatpush.msra.mxu0 %v38
    %877 = vmatmul.f32.gmra.mxu0 %v773
    %v878 = vpop.f32.mrf.mxu0
    %v879 = vadd.f32 0.0, %v878
    %880 = vdwg.mxu0
    %v882 = vrot.slane %v879, 5
    %v884 = vadd.f32 %v264, %v882
    %v885 = vxor.u32 %v884, 2147483648
    %v886 = vmul.f32 %v885, 1.442695
    %v887 = vpow.pop %v886
    %v888 = vadd.f32 %v887, 1.0
    %v889 = vrcp.pop %v888
    %v890 = vmul.f32 %v888, %v889
    %v891 = vsub.f32 1.0, %v890
    %v892 = vmul.f32 %v889, %v891
    %v893 = vadd.f32 %v889, %v892
    %vm894 = vweird.f32 %v888
    %vm895 = vweird.f32 %v889
    %vm896 = vmor %vm894, %vm895
    %v897 = vsel %vm896, %v889, %v893
    %v898 = vand.u32 2147483647, %v888
    %vm899 = vcmp.eq.f32.partialorder %v898, 8.507059e+37
    %v900 = vand.u32 %v888, 2147483648
    %v901 = vor.u32 1.1754944e-38, %v900
    %v902 = vsel %vm899, %v901, %v897
    %v903 = vmul.f32 1.0, %v902
    %904 = vmatpush.msra.mxu0 0.0
    %905 = vmatpush.msra.mxu0 0.0
    %906 = vmatpush.msra.mxu0 0.0
    %907 = vmatpush.msra.mxu0 0.0
    %908 = vmatpush.msra.mxu0 0.0
    %909 = vmatpush.msra.mxu0 0.0
    %910 = vmatpush.msra.mxu0 0.0
    %911 = vmatpush.msra.mxu0 0.0
    %912 = vmatpush.msra.mxu0 0.0
    %913 = vmatpush.msra.mxu0 0.0
    %914 = vmatpush.msra.mxu0 0.0
    %915 = vmatpush.msra.mxu0 0.0
    %916 = vmatpush.msra.mxu0 0.0
    %917 = vmatpush.msra.mxu0 0.0
    %918 = vmatpush.msra.mxu0 %v41
    %919 = vmatpush.msra.mxu0 %v40
    %920 = vmatmul.f32.gmra.mxu0 %v773
    %v921 = vpop.f32.mrf.mxu0
    %v922 = vadd.f32 0.0, %v921
    %923 = vdwg.mxu0
    %v925 = vrot.slane %v922, 5
    %v927 = vadd.f32 %v285, %v925
    %v928 = vtanh.pop %v927
    %v930 = vrot.slane %v767, 7
    %v932 = vmul.f32 %v860, %v930
    %v933 = vmul.f32 %v817, %v928
    %v934 = vadd.f32 %v932, %v933
    %v935 = vtanh.pop %v934
    %v936 = vmul.f32 %v903, %v935
    %v937 = vmax.f32 %v936, 0.0
    %vm938 = vcmask 1040384
    %v939 = vsel %vm938, %v437, %v603
    %vm940 = vcmask 1041408
    %v941 = vsel %vm940, %v939, %v770
    %vm942 = vcmask 1042432
    %v943 = vsel %vm942, %v941, %v937
    %v945 = vsel %vm160, %v943, 0
    %947 = vmatpush.msra.mxu0 0.0
    %948 = vmatpush.msra.mxu0 0.0
    %949 = vmatpush.msra.mxu0 0.0
    %950 = vmatpush.msra.mxu0 0.0
    %951 = vmatpush.msra.mxu0 0.0
    %952 = vmatpush.msra.mxu0 0.0
    %953 = vmatpush.msra.mxu0 0.0
    %954 = vmatpush.msra.mxu0 0.0
    %955 = vmatpush.msra.mxu0 0.0
    %956 = vmatpush.msra.mxu0 0.0
    %957 = vmatpush.msra.mxu0 0.0
    %958 = vmatpush.msra.mxu0 0.0
    %959 = vmatpush.msra.mxu0 0.0
    %960 = vmatpush.msra.mxu0 0.0
    %961 = vmatpush.msra.mxu0 %v52
    %962 = vmatpush.msra.mxu0 %v51
    %963 = vmatmul.f32.gmra.mxu0 %v945
    %v964 = vpop.f32.mrf.mxu0
    %v965 = vadd.f32 0.0, %v964
    %966 = vdwg.mxu0
    %v967 = vperm.slane %v47, 0
    %vm968 = vcmask 48128
    %v970 = vsel %vm968, %v18, 0
    %vm972 = vcmask 1045504
    %v974 = vsel %vm972, %v46, 0
    %976 = vmatpush.msra.mxu0 0.0
    %977 = vmatpush.msra.mxu0 0.0
    %978 = vmatpush.msra.mxu0 0.0
    %979 = vmatpush.msra.mxu0 0.0
    %980 = vmatpush.msra.mxu0 0.0
    %981 = vmatpush.msra.mxu0 0.0
    %982 = vmatpush.msra.mxu0 0.0
    %983 = vmatpush.msra.mxu0 0.0
    %984 = vmatpush.msra.mxu0 0.0
    %985 = vmatpush.msra.mxu0 0.0
    %986 = vmatpush.msra.mxu0 0.0
    %987 = vmatpush.msra.mxu0 0.0
    %988 = vmatpush.msra.mxu0 0.0
    %989 = vmatpush.msra.mxu0 0.0
    %990 = vmatpush.msra.mxu0 0.0
    %991 = vmatpush.msra.mxu0 %v974
    %992 = vmatmul.f32.gmra.mxu0 %v970
    %v993 = vpop.f32.mrf.mxu0
    %v994 = vadd.f32 %v967, %v993
    %995 = vdwg.mxu0
    %v996 = vperm.slane %v50, 0
    %v997 = vperm.slane %v55, 0
    %v998 = vperm.slane %v58, 0
    %v999 = vperm.slane %v60, 0
    %v1000 = vlaneseq
    %v1001 = vshrl.u32 %v1000, 7
    %vm1002 = vcmp.le.s32.totalorder %v1001, 0
    %v1003 = vsel %vm1002, 1, 0
    %v1004 = vcvt.s32.f32 %v1003
    %v1006 = vsel %vm160, %v994, 0
    %1008 = vmatpush.msra.mxu0 0.0
    %1009 = vmatpush.msra.mxu0 0.0
    %1010 = vmatpush.msra.mxu0 0.0
    %1011 = vmatpush.msra.mxu0 0.0
    %1012 = vmatpush.msra.mxu0 0.0
    %1013 = vmatpush.msra.mxu0 0.0
    %1014 = vmatpush.msra.mxu0 0.0
    %1015 = vmatpush.msra.mxu0 0.0
    %1016 = vmatpush.msra.mxu0 0.0
    %1017 = vmatpush.msra.mxu0 0.0
    %1018 = vmatpush.msra.mxu0 0.0
    %1019 = vmatpush.msra.mxu0 0.0
    %1020 = vmatpush.msra.mxu0 0.0
    %1021 = vmatpush.msra.mxu0 0.0
    %1022 = vmatpush.msra.mxu0 %v49
    %1023 = vmatpush.msra.mxu0 %v48
    %1024 = vmatmul.f32.gmra.mxu0 %v1006
    %v1025 = vpop.f32.mrf.mxu0
    %v1026 = vadd.f32 %v996, %v1025
    %1027 = vdwg.mxu0
    %v1028 = vxor.u32 %v1026, 2147483648
    %v1029 = vmul.f32 %v1028, 1.442695
    %v1030 = vpow.pop %v1029
    %v1031 = vadd.f32 %v1030, 1.0
    %v1032 = vrcp.pop %v1031
    %v1033 = vmul.f32 %v1031, %v1032
    %v1034 = vsub.f32 1.0, %v1033
    %v1035 = vmul.f32 %v1032, %v1034
    %v1036 = vadd.f32 %v1032, %v1035
    %vm1037 = vweird.f32 %v1031
    %vm1038 = vweird.f32 %v1032
    %vm1039 = vmor %vm1037, %vm1038
    %v1040 = vsel %vm1039, %v1032, %v1036
    %v1041 = vand.u32 2147483647, %v1031
    %vm1042 = vcmp.eq.f32.partialorder %v1041, 8.507059e+37
    %v1043 = vand.u32 %v1031, 2147483648
    %v1044 = vor.u32 1.1754944e-38, %v1043
    %v1045 = vsel %vm1042, %v1044, %v1040
    %v1046 = vmul.f32 1.0, %v1045
    %1048 = vrot.lane.b32.xlu0 %v965, 16
    %v1049 = vpop.permute.xlu0 %1048
    %v1051 = vadd.f32 %v1026, %v1049
    %v1052 = vmax.f32 %v1051, 0.0
    %1054 = vrot.lane.b32.xlu0 %v1052, 112
    %v1055 = vpop.permute.xlu0 %1054
    %v1056 = vsel %vm160, %v1055, 0
    %1058 = vmatpush.msra.mxu0 0.0
    %1059 = vmatpush.msra.mxu0 0.0
    %1060 = vmatpush.msra.mxu0 0.0
    %1061 = vmatpush.msra.mxu0 0.0
    %1062 = vmatpush.msra.mxu0 0.0
    %1063 = vmatpush.msra.mxu0 0.0
    %1064 = vmatpush.msra.mxu0 0.0
    %1065 = vmatpush.msra.mxu0 0.0
    %1066 = vmatpush.msra.mxu0 0.0
    %1067 = vmatpush.msra.mxu0 0.0
    %1068 = vmatpush.msra.mxu0 0.0
    %1069 = vmatpush.msra.mxu0 0.0
    %1070 = vmatpush.msra.mxu0 0.0
    %1071 = vmatpush.msra.mxu0 0.0
    %1072 = vmatpush.msra.mxu0 %v54
    %1073 = vmatpush.msra.mxu0 %v53
    %1074 = vmatmul.f32.gmra.mxu0 %v1056
    %v1075 = vpop.f32.mrf.mxu0
    %v1076 = vadd.f32 %v997, %v1075
    %1077 = vdwg.mxu0
    %v1078 = vmul.f32 %v1076, %v1046
    %v1079 = vmul.f32 %v1078, %v1004
    %vm1080 = vcmask 125952
    %v1081 = vsel %vm1080, %v1079, 0.0
    %v1082 = vrot.slane %v1081, 4
    %v1083 = vadd.f32 %v1081, %v1082
    %v1084 = vrot.slane %v1083, 2
    %v1085 = vadd.f32 %v1083, %v1084
    %v1086 = vrot.slane %v1085, 1
    %v1087 = vadd.f32 %v1085, %v1086
    %v1088 = vadd.f32 %v994, %v1087
    %v1089 = vsel %vm1080, %v1088, 0.0
    %1090 = vadd.xlane.f32.xlu0 %v1089
    %v1091 = vpop.xlane.xlu0 %1090
    %v1092 = vrcp.pop 16.0
    %v1093 = vmul.f32 16.0, %v1092
    %v1094 = vsub.f32 1.0, %v1093
    %v1095 = vmul.f32 %v1092, %v1094
    %v1096 = vadd.f32 %v1092, %v1095
    %vm1097 = vweird.f32 %v1092
    %v1098 = vsel %vm1097, %v1092, %v1096
    %v1099 = vmul.f32 %v1091, %v1098
    %v1100 = vsub.f32 %v1088, %v1099
    %v1101 = vmul.f32 %v1100, %v1100
    %v1102 = vsel %vm1080, %v1101, 0.0
    %1103 = vadd.xlane.f32.xlu0 %v1102
    %v1104 = vpop.xlane.xlu0 %1103
    %v1105 = vmul.f32 %v1104, %v1098
    %v1106 = vadd.f32 %v1105, 1e-05
    %v1107 = vrsqrt.pop %v1106
    %v1108 = vmul.f32 %v1107, %v1106
    %v1109 = vmul.f32 %v1108, %v1107
    %v1110 = vmul.f32 0.5, %v1109
    %v1111 = vsub.f32 1.5, %v1110
    %v1112 = vmul.f32 %v1107, %v1111
    %vm1113 = vweird.f32 %v1106
    %vm1114 = vweird.f32 %v1107
    %vm1115 = vmor %vm1113, %vm1114
    %v1116 = vsel %vm1115, %v1107, %v1112
    %v1117 = vmul.f32 %v1100, %v1116
    %v1118 = vmul.f32 %v1004, %v1117
    %v1119 = vsub.f32 1.0, %v1004
    %v1120 = vmul.f32 %v1119, %v994
    %v1121 = vadd.f32 %v1118, %v1120
    %v1123 = vsel %vm160, %v1121, 0
    %1125 = vmatpush.msra.mxu0 0.0
    %1126 = vmatpush.msra.mxu0 0.0
    %1127 = vmatpush.msra.mxu0 0.0
    %1128 = vmatpush.msra.mxu0 0.0
    %1129 = vmatpush.msra.mxu0 0.0
    %1130 = vmatpush.msra.mxu0 0.0
    %1131 = vmatpush.msra.mxu0 0.0
    %1132 = vmatpush.msra.mxu0 0.0
    %1133 = vmatpush.msra.mxu0 0.0
    %1134 = vmatpush.msra.mxu0 0.0
    %1135 = vmatpush.msra.mxu0 0.0
    %1136 = vmatpush.msra.mxu0 0.0
    %1137 = vmatpush.msra.mxu0 0.0
    %1138 = vmatpush.msra.mxu0 0.0
    %1139 = vmatpush.msra.mxu0 %v57
    %1140 = vmatpush.msra.mxu0 %v56
    %1141 = vmatmul.f32.gmra.mxu0 %v1123
    %v1142 = vpop.f32.mrf.mxu0
    %v1143 = vadd.f32 %v998, %v1142
    %1144 = vdwg.mxu0
    %v1145 = vmax.f32 %v1143, 0.0
    %v1147 = vsel %vm157, %v1145, 0
    %1149 = vmatpush.msra.mxu0 0.0
    %1150 = vmatpush.msra.mxu0 0.0
    %1151 = vmatpush.msra.mxu0 0.0
    %1152 = vmatpush.msra.mxu0 0.0
    %1153 = vmatpush.msra.mxu0 0.0
    %1154 = vmatpush.msra.mxu0 0.0
    %1155 = vmatpush.msra.mxu0 0.0
    %1156 = vmatpush.msra.mxu0 0.0
    %1157 = vmatpush.msra.mxu0 0.0
    %1158 = vmatpush.msra.mxu0 0.0
    %1159 = vmatpush.msra.mxu0 0.0
    %1160 = vmatpush.msra.mxu0 0.0
    %1161 = vmatpush.msra.mxu0 0.0
    %1162 = vmatpush.msra.mxu0 0.0
    %1163 = vmatpush.msra.mxu0 0.0
    %1164 = vmatpush.msra.mxu0 %v59
    %1165 = vmatmul.f32.gmra.mxu0 %v1147
    %v1166 = vpop.f32.mrf.mxu0
    %v1167 = vadd.f32 %v999, %v1166
    %1168 = vdwg.mxu0
    %v1169 = vxor.u32 %v1167, 2147483648
    %v1170 = vmul.f32 %v1169, 1.442695
    %v1171 = vpow.pop %v1170
    %v1172 = vadd.f32 %v1171, 1.0
    %v1173 = vrcp.pop %v1172
    %v1174 = vmul.f32 %v1172, %v1173
    %v1175 = vsub.f32 1.0, %v1174
    %v1176 = vmul.f32 %v1173, %v1175
    %v1177 = vadd.f32 %v1173, %v1176
    %vm1178 = vweird.f32 %v1172
    %vm1179 = vweird.f32 %v1173
    %vm1180 = vmor %vm1178, %vm1179
    %v1181 = vsel %vm1180, %v1173, %v1177
    %v1182 = vand.u32 2147483647, %v1172
    %vm1183 = vcmp.eq.f32.partialorder %v1182, 8.507059e+37
    %v1184 = vand.u32 %v1172, 2147483648
    %v1185 = vor.u32 1.1754944e-38, %v1184
    %v1186 = vsel %vm1183, %v1185, %v1181
    %v1187 = vmul.f32 1.0, %v1186
    %v1188 = vsub.f32 %v19, %v1187
    %v1189 = vand.u32 2147483647, %v1188
    %v1190 = vmul.f32 %v1189, %v1004
    %vm1191 = vcmask 3072
    %v1192 = vsel %vm1191, %v1190, 0.0
    %v1193 = vrot.slane %v1192, 4
    %v1194 = vadd.f32 %v1192, %v1193
    %v1195 = vrot.slane %v1194, 2
    %v1196 = vadd.f32 %v1194, %v1195
    %v1197 = vrot.slane %v1196, 1
    %v1198 = vadd.f32 %v1196, %v1197
    %v1199 = vadd.f32 %v1198, 0.0
    %vm1200 = vcmp.le.s32.totalorder %v1001, 1
    %v1201 = vsel %vm1200, 1, 0
    %v1202 = vcvt.s32.f32 %v1201
    %1203 = vmatpush.msra.mxu0 0.0
    %1204 = vmatpush.msra.mxu0 0.0
    %1205 = vmatpush.msra.mxu0 0.0
    %1206 = vmatpush.msra.mxu0 0.0
    %1207 = vmatpush.msra.mxu0 0.0
    %1208 = vmatpush.msra.mxu0 0.0
    %1209 = vmatpush.msra.mxu0 0.0
    %1210 = vmatpush.msra.mxu0 0.0
    %1211 = vmatpush.msra.mxu0 0.0
    %1212 = vmatpush.msra.mxu0 0.0
    %1213 = vmatpush.msra.mxu0 0.0
    %1214 = vmatpush.msra.mxu0 0.0
    %1215 = vmatpush.msra.mxu0 0.0
    %1216 = vmatpush.msra.mxu0 0.0
    %1217 = vmatpush.msra.mxu0 %v49
    %1218 = vmatpush.msra.mxu0 %v48
    %1219 = vmatmul.f32.gmra.mxu0 %v1123
    %v1220 = vpop.f32.mrf.mxu0
    %v1221 = vadd.f32 %v996, %v1220
    %1222 = vdwg.mxu0
    %v1223 = vxor.u32 %v1221, 2147483648
    %v1224 = vmul.f32 %v1223, 1.442695
    %v1225 = vpow.pop %v1224
    %v1226 = vadd.f32 %v1225, 1.0
    %v1227 = vrcp.pop %v1226
    %v1228 = vmul.f32 %v1226, %v1227
    %v1229 = vsub.f32 1.0, %v1228
    %v1230 = vmul.f32 %v1227, %v1229
    %v1231 = vadd.f32 %v1227, %v1230
    %vm1232 = vweird.f32 %v1226
    %vm1233 = vweird.f32 %v1227
    %vm1234 = vmor %vm1232, %vm1233
    %v1235 = vsel %vm1234, %v1227, %v1231
    %v1236 = vand.u32 2147483647, %v1226
    %vm1237 = vcmp.eq.f32.partialorder %v1236, 8.507059e+37
    %v1238 = vand.u32 %v1226, 2147483648
    %v1239 = vor.u32 1.1754944e-38, %v1238
    %v1240 = vsel %vm1237, %v1239, %v1235
    %v1241 = vmul.f32 1.0, %v1240
    %v1242 = vadd.f32 %v1221, %v1049
    %v1243 = vmax.f32 %v1242, 0.0
    %1245 = vrot.lane.b32.xlu0 %v1243, 112
    %v1246 = vpop.permute.xlu0 %1245
    %v1247 = vsel %vm160, %v1246, 0
    %1249 = vmatpush.msra.mxu0 0.0
    %1250 = vmatpush.msra.mxu0 0.0
    %1251 = vmatpush.msra.mxu0 0.0
    %1252 = vmatpush.msra.mxu0 0.0
    %1253 = vmatpush.msra.mxu0 0.0
    %1254 = vmatpush.msra.mxu0 0.0
    %1255 = vmatpush.msra.mxu0 0.0
    %1256 = vmatpush.msra.mxu0 0.0
    %1257 = vmatpush.msra.mxu0 0.0
    %1258 = vmatpush.msra.mxu0 0.0
    %1259 = vmatpush.msra.mxu0 0.0
    %1260 = vmatpush.msra.mxu0 0.0
    %1261 = vmatpush.msra.mxu0 0.0
    %1262 = vmatpush.msra.mxu0 0.0
    %1263 = vmatpush.msra.mxu0 %v54
    %1264 = vmatpush.msra.mxu0 %v53
    %1265 = vmatmul.f32.gmra.mxu0 %v1247
    %v1266 = vpop.f32.mrf.mxu0
    %v1267 = vadd.f32 %v997, %v1266
    %1268 = vdwg.mxu0
    %v1269 = vmul.f32 %v1267, %v1241
    %v1270 = vmul.f32 %v1269, %v1202
    %v1271 = vsel %vm1080, %v1270, 0.0
    %v1272 = vrot.slane %v1271, 4
    %v1273 = vadd.f32 %v1271, %v1272
    %v1274 = vrot.slane %v1273, 2
    %v1275 = vadd.f32 %v1273, %v1274
    %v1276 = vrot.slane %v1275, 1
    %v1277 = vadd.f32 %v1275, %v1276
    %v1278 = vmul.f32 %v1277, 0.5
    %v1279 = vadd.f32 %v1121, %v1278
    %v1280 = vsel %vm1080, %v1279, 0.0
    %1281 = vadd.xlane.f32.xlu0 %v1280
    %v1282 = vpop.xlane.xlu0 %1281
    %v1283 = vmul.f32 %v1282, %v1098
    %v1284 = vsub.f32 %v1279, %v1283
    %v1285 = vmul.f32 %v1284, %v1284
    %v1286 = vsel %vm1080, %v1285, 0.0
    %1287 = vadd.xlane.f32.xlu0 %v1286
    %v1288 = vpop.xlane.xlu0 %1287
    %v1289 = vmul.f32 %v1288, %v1098
    %v1290 = vadd.f32 %v1289, 1e-05
    %v1291 = vrsqrt.pop %v1290
    %v1292 = vmul.f32 %v1291, %v1290
    %v1293 = vmul.f32 %v1292, %v1291
    %v1294 = vmul.f32 0.5, %v1293
    %v1295 = vsub.f32 1.5, %v1294
    %v1296 = vmul.f32 %v1291, %v1295
    %vm1297 = vweird.f32 %v1290
    %vm1298 = vweird.f32 %v1291
    %vm1299 = vmor %vm1297, %vm1298
    %v1300 = vsel %vm1299, %v1291, %v1296
    %v1301 = vmul.f32 %v1284, %v1300
    %v1302 = vmul.f32 %v1202, %v1301
    %v1303 = vsub.f32 1.0, %v1202
    %v1304 = vmul.f32 %v1303, %v1121
    %v1305 = vadd.f32 %v1302, %v1304
    %v1307 = vsel %vm160, %v1305, 0
    %1309 = vmatpush.msra.mxu0 0.0
    %1310 = vmatpush.msra.mxu0 0.0
    %1311 = vmatpush.msra.mxu0 0.0
    %1312 = vmatpush.msra.mxu0 0.0
    %1313 = vmatpush.msra.mxu0 0.0
    %1314 = vmatpush.msra.mxu0 0.0
    %1315 = vmatpush.msra.mxu0 0.0
    %1316 = vmatpush.msra.mxu0 0.0
    %1317 = vmatpush.msra.mxu0 0.0
    %1318 = vmatpush.msra.mxu0 0.0
    %1319 = vmatpush.msra.mxu0 0.0
    %1320 = vmatpush.msra.mxu0 0.0
    %1321 = vmatpush.msra.mxu0 0.0
    %1322 = vmatpush.msra.mxu0 0.0
    %1323 = vmatpush.msra.mxu0 %v57
    %1324 = vmatpush.msra.mxu0 %v56
    %1325 = vmatmul.f32.gmra.mxu0 %v1307
    %v1326 = vpop.f32.mrf.mxu0
    %v1327 = vadd.f32 %v998, %v1326
    %1328 = vdwg.mxu0
    %v1329 = vmax.f32 %v1327, 0.0
    %v1331 = vsel %vm157, %v1329, 0
    %1333 = vmatpush.msra.mxu0 0.0
    %1334 = vmatpush.msra.mxu0 0.0
    %1335 = vmatpush.msra.mxu0 0.0
    %1336 = vmatpush.msra.mxu0 0.0
    %1337 = vmatpush.msra.mxu0 0.0
    %1338 = vmatpush.msra.mxu0 0.0
    %1339 = vmatpush.msra.mxu0 0.0
    %1340 = vmatpush.msra.mxu0 0.0
    %1341 = vmatpush.msra.mxu0 0.0
    %1342 = vmatpush.msra.mxu0 0.0
    %1343 = vmatpush.msra.mxu0 0.0
    %1344 = vmatpush.msra.mxu0 0.0
    %1345 = vmatpush.msra.mxu0 0.0
    %1346 = vmatpush.msra.mxu0 0.0
    %1347 = vmatpush.msra.mxu0 0.0
    %1348 = vmatpush.msra.mxu0 %v59
    %1349 = vmatmul.f32.gmra.mxu0 %v1331
    %v1350 = vpop.f32.mrf.mxu0
    %v1351 = vadd.f32 %v999, %v1350
    %1352 = vdwg.mxu0
    %v1353 = vxor.u32 %v1351, 2147483648
    %v1354 = vmul.f32 %v1353, 1.442695
    %v1355 = vpow.pop %v1354
    %v1356 = vadd.f32 %v1355, 1.0
    %v1357 = vrcp.pop %v1356
    %v1358 = vmul.f32 %v1356, %v1357
    %v1359 = vsub.f32 1.0, %v1358
    %v1360 = vmul.f32 %v1357, %v1359
    %v1361 = vadd.f32 %v1357, %v1360
    %vm1362 = vweird.f32 %v1356
    %vm1363 = vweird.f32 %v1357
    %vm1364 = vmor %vm1362, %vm1363
    %v1365 = vsel %vm1364, %v1357, %v1361
    %v1366 = vand.u32 2147483647, %v1356
    %vm1367 = vcmp.eq.f32.partialorder %v1366, 8.507059e+37
    %v1368 = vand.u32 %v1356, 2147483648
    %v1369 = vor.u32 1.1754944e-38, %v1368
    %v1370 = vsel %vm1367, %v1369, %v1365
    %v1371 = vmul.f32 1.0, %v1370
    %v1372 = vsub.f32 %v19, %v1371
    %v1373 = vand.u32 2147483647, %v1372
    %v1374 = vmul.f32 %v1373, %v1202
    %v1375 = vsel %vm1191, %v1374, 0.0
    %v1376 = vrot.slane %v1375, 4
    %v1377 = vadd.f32 %v1375, %v1376
    %v1378 = vrot.slane %v1377, 2
    %v1379 = vadd.f32 %v1377, %v1378
    %v1380 = vrot.slane %v1379, 1
    %v1381 = vadd.f32 %v1379, %v1380
    %v1382 = vmul.f32 %v1381, 0.5
    %v1383 = vadd.f32 %v1199, %v1382
    %vm1384 = vcmp.le.s32.totalorder %v1001, 2
    %v1385 = vsel %vm1384, 1, 0
    %v1386 = vcvt.s32.f32 %v1385
    %1387 = vmatpush.msra.mxu0 0.0
    %1388 = vmatpush.msra.mxu0 0.0
    %1389 = vmatpush.msra.mxu0 0.0
    %1390 = vmatpush.msra.mxu0 0.0
    %1391 = vmatpush.msra.mxu0 0.0
    %1392 = vmatpush.msra.mxu0 0.0
    %1393 = vmatpush.msra.mxu0 0.0
    %1394 = vmatpush.msra.mxu0 0.0
    %1395 = vmatpush.msra.mxu0 0.0
    %1396 = vmatpush.msra.mxu0 0.0
    %1397 = vmatpush.msra.mxu0 0.0
    %1398 = vmatpush.msra.mxu0 0.0
    %1399 = vmatpush.msra.mxu0 0.0
    %1400 = vmatpush.msra.mxu0 0.0
    %1401 = vmatpush.msra.mxu0 %v49
    %1402 = vmatpush.msra.mxu0 %v48
    %1403 = vmatmul.f32.gmra.mxu0 %v1307
    %v1404 = vpop.f32.mrf.mxu0
    %v1405 = vadd.f32 %v996, %v1404
    %1406 = vdwg.mxu0
    %v1407 = vxor.u32 %v1405, 2147483648
    %v1408 = vmul.f32 %v1407, 1.442695
    %v1409 = vpow.pop %v1408
    %v1410 = vadd.f32 %v1409, 1.0
    %v1411 = vrcp.pop %v1410
    %v1412 = vmul.f32 %v1410, %v1411
    %v1413 = vsub.f32 1.0, %v1412
    %v1414 = vmul.f32 %v1411, %v1413
    %v1415 = vadd.f32 %v1411, %v1414
    %vm1416 = vweird.f32 %v1410
    %vm1417 = vweird.f32 %v1411
    %vm1418 = vmor %vm1416, %vm1417
    %v1419 = vsel %vm1418, %v1411, %v1415
    %v1420 = vand.u32 2147483647, %v1410
    %vm1421 = vcmp.eq.f32.partialorder %v1420, 8.507059e+37
    %v1422 = vand.u32 %v1410, 2147483648
    %v1423 = vor.u32 1.1754944e-38, %v1422
    %v1424 = vsel %vm1421, %v1423, %v1419
    %v1425 = vmul.f32 1.0, %v1424
    %v1426 = vadd.f32 %v1405, %v1049
    %v1427 = vmax.f32 %v1426, 0.0
    %1429 = vrot.lane.b32.xlu0 %v1427, 112
    %v1430 = vpop.permute.xlu0 %1429
    %v1431 = vsel %vm160, %v1430, 0
    %1433 = vmatpush.msra.mxu0 0.0
    %1434 = vmatpush.msra.mxu0 0.0
    %1435 = vmatpush.msra.mxu0 0.0
    %1436 = vmatpush.msra.mxu0 0.0
    %1437 = vmatpush.msra.mxu0 0.0
    %1438 = vmatpush.msra.mxu0 0.0
    %1439 = vmatpush.msra.mxu0 0.0
    %1440 = vmatpush.msra.mxu0 0.0
    %1441 = vmatpush.msra.mxu0 0.0
    %1442 = vmatpush.msra.mxu0 0.0
    %1443 = vmatpush.msra.mxu0 0.0
    %1444 = vmatpush.msra.mxu0 0.0
    %1445 = vmatpush.msra.mxu0 0.0
    %1446 = vmatpush.msra.mxu0 0.0
    %1447 = vmatpush.msra.mxu0 %v54
    %1448 = vmatpush.msra.mxu0 %v53
    %1449 = vmatmul.f32.gmra.mxu0 %v1431
    %v1450 = vpop.f32.mrf.mxu0
    %v1451 = vadd.f32 %v997, %v1450
    %1452 = vdwg.mxu0
    %v1453 = vmul.f32 %v1451, %v1425
    %v1454 = vmul.f32 %v1453, %v1386
    %v1455 = vsel %vm1080, %v1454, 0.0
    %v1456 = vrot.slane %v1455, 4
    %v1457 = vadd.f32 %v1455, %v1456
    %v1458 = vrot.slane %v1457, 2
    %v1459 = vadd.f32 %v1457, %v1458
    %v1460 = vrot.slane %v1459, 1
    %v1461 = vadd.f32 %v1459, %v1460
    %v1462 = vmul.f32 %v1461, 0.33333334
    %v1463 = vadd.f32 %v1305, %v1462
    %v1464 = vsel %vm1080, %v1463, 0.0
    %1465 = vadd.xlane.f32.xlu0 %v1464
    %v1466 = vpop.xlane.xlu0 %1465
    %v1467 = vmul.f32 %v1466, %v1098
    %v1468 = vsub.f32 %v1463, %v1467
    %v1469 = vmul.f32 %v1468, %v1468
    %v1470 = vsel %vm1080, %v1469, 0.0
    %1471 = vadd.xlane.f32.xlu0 %v1470
    %v1472 = vpop.xlane.xlu0 %1471
    %v1473 = vmul.f32 %v1472, %v1098
    %v1474 = vadd.f32 %v1473, 1e-05
    %v1475 = vrsqrt.pop %v1474
    %v1476 = vmul.f32 %v1475, %v1474
    %v1477 = vmul.f32 %v1476, %v1475
    %v1478 = vmul.f32 0.5, %v1477
    %v1479 = vsub.f32 1.5, %v1478
    %v1480 = vmul.f32 %v1475, %v1479
    %vm1481 = vweird.f32 %v1474
    %vm1482 = vweird.f32 %v1475
    %vm1483 = vmor %vm1481, %vm1482
    %v1484 = vsel %vm1483, %v1475, %v1480
    %v1485 = vmul.f32 %v1468, %v1484
    %v1486 = vmul.f32 %v1386, %v1485
    %v1487 = vsub.f32 1.0, %v1386
    %v1488 = vmul.f32 %v1487, %v1305
    %v1489 = vadd.f32 %v1486, %v1488
    %v1491 = vsel %vm160, %v1489, 0
    %1493 = vmatpush.msra.mxu0 0.0
    %1494 = vmatpush.msra.mxu0 0.0
    %1495 = vmatpush.msra.mxu0 0.0
    %1496 = vmatpush.msra.mxu0 0.0
    %1497 = vmatpush.msra.mxu0 0.0
    %1498 = vmatpush.msra.mxu0 0.0
    %1499 = vmatpush.msra.mxu0 0.0
    %1500 = vmatpush.msra.mxu0 0.0
    %1501 = vmatpush.msra.mxu0 0.0
    %1502 = vmatpush.msra.mxu0 0.0
    %1503 = vmatpush.msra.mxu0 0.0
    %1504 = vmatpush.msra.mxu0 0.0
    %1505 = vmatpush.msra.mxu0 0.0
    %1506 = vmatpush.msra.mxu0 0.0
    %1507 = vmatpush.msra.mxu0 %v57
    %1508 = vmatpush.msra.mxu0 %v56
    %1509 = vmatmul.f32.gmra.mxu0 %v1491
    %v1510 = vpop.f32.mrf.mxu0
    %v1511 = vadd.f32 %v998, %v1510
    %1512 = vdwg.mxu0
    %v1513 = vmax.f32 %v1511, 0.0
    %v1515 = vsel %vm157, %v1513, 0
    %1517 = vmatpush.msra.mxu0 0.0
    %1518 = vmatpush.msra.mxu0 0.0
    %1519 = vmatpush.msra.mxu0 0.0
    %1520 = vmatpush.msra.mxu0 0.0
    %1521 = vmatpush.msra.mxu0 0.0
    %1522 = vmatpush.msra.mxu0 0.0
    %1523 = vmatpush.msra.mxu0 0.0
    %1524 = vmatpush.msra.mxu0 0.0
    %1525 = vmatpush.msra.mxu0 0.0
    %1526 = vmatpush.msra.mxu0 0.0
    %1527 = vmatpush.msra.mxu0 0.0
    %1528 = vmatpush.msra.mxu0 0.0
    %1529 = vmatpush.msra.mxu0 0.0
    %1530 = vmatpush.msra.mxu0 0.0
    %1531 = vmatpush.msra.mxu0 0.0
    %1532 = vmatpush.msra.mxu0 %v59
    %1533 = vmatmul.f32.gmra.mxu0 %v1515
    %v1534 = vpop.f32.mrf.mxu0
    %v1535 = vadd.f32 %v999, %v1534
    %1536 = vdwg.mxu0
    %v1537 = vxor.u32 %v1535, 2147483648
    %v1538 = vmul.f32 %v1537, 1.442695
    %v1539 = vpow.pop %v1538
    %v1540 = vadd.f32 %v1539, 1.0
    %v1541 = vrcp.pop %v1540
    %v1542 = vmul.f32 %v1540, %v1541
    %v1543 = vsub.f32 1.0, %v1542
    %v1544 = vmul.f32 %v1541, %v1543
    %v1545 = vadd.f32 %v1541, %v1544
    %vm1546 = vweird.f32 %v1540
    %vm1547 = vweird.f32 %v1541
    %vm1548 = vmor %vm1546, %vm1547
    %v1549 = vsel %vm1548, %v1541, %v1545
    %v1550 = vand.u32 2147483647, %v1540
    %vm1551 = vcmp.eq.f32.partialorder %v1550, 8.507059e+37
    %v1552 = vand.u32 %v1540, 2147483648
    %v1553 = vor.u32 1.1754944e-38, %v1552
    %v1554 = vsel %vm1551, %v1553, %v1549
    %v1555 = vmul.f32 1.0, %v1554
    %v1556 = vsub.f32 %v19, %v1555
    %v1557 = vand.u32 2147483647, %v1556
    %v1558 = vmul.f32 %v1557, %v1386
    %v1559 = vsel %vm1191, %v1558, 0.0
    %v1560 = vrot.slane %v1559, 4
    %v1561 = vadd.f32 %v1559, %v1560
    %v1562 = vrot.slane %v1561, 2
    %v1563 = vadd.f32 %v1561, %v1562
    %v1564 = vrot.slane %v1563, 1
    %v1565 = vadd.f32 %v1563, %v1564
    %v1566 = vmul.f32 %v1565, 0.33333334
    %v1567 = vadd.f32 %v1383, %v1566
    %vm1568 = vcmp.le.s32.totalorder %v1001, 3
    %v1569 = vsel %vm1568, 1, 0
    %v1570 = vcvt.s32.f32 %v1569
    %1571 = vmatpush.msra.mxu0 0.0
    %1572 = vmatpush.msra.mxu0 0.0
    %1573 = vmatpush.msra.mxu0 0.0
    %1574 = vmatpush.msra.mxu0 0.0
    %1575 = vmatpush.msra.mxu0 0.0
    %1576 = vmatpush.msra.mxu0 0.0
    %1577 = vmatpush.msra.mxu0 0.0
    %1578 = vmatpush.msra.mxu0 0.0
    %1579 = vmatpush.msra.mxu0 0.0
    %1580 = vmatpush.msra.mxu0 0.0
    %1581 = vmatpush.msra.mxu0 0.0
    %1582 = vmatpush.msra.mxu0 0.0
    %1583 = vmatpush.msra.mxu0 0.0
    %1584 = vmatpush.msra.mxu0 0.0
    %1585 = vmatpush.msra.mxu0 %v49
    %1586 = vmatpush.msra.mxu0 %v48
    %1587 = vmatmul.f32.gmra.mxu0 %v1491
    %v1588 = vpop.f32.mrf.mxu0
    %v1589 = vadd.f32 %v996, %v1588
    %1590 = vdwg.mxu0
    %v1591 = vxor.u32 %v1589, 2147483648
    %v1592 = vmul.f32 %v1591, 1.442695
    %v1593 = vpow.pop %v1592
    %v1594 = vadd.f32 %v1593, 1.0
    %v1595 = vrcp.pop %v1594
    %v1596 = vmul.f32 %v1594, %v1595
    %v1597 = vsub.f32 1.0, %v1596
    %v1598 = vmul.f32 %v1595, %v1597
    %v1599 = vadd.f32 %v1595, %v1598
    %vm1600 = vweird.f32 %v1594
    %vm1601 = vweird.f32 %v1595
    %vm1602 = vmor %vm1600, %vm1601
    %v1603 = vsel %vm1602, %v1595, %v1599
    %v1604 = vand.u32 2147483647, %v1594
    %vm1605 = vcmp.eq.f32.partialorder %v1604, 8.507059e+37
    %v1606 = vand.u32 %v1594, 2147483648
    %v1607 = vor.u32 1.1754944e-38, %v1606
    %v1608 = vsel %vm1605, %v1607, %v1603
    %v1609 = vmul.f32 1.0, %v1608
    %v1610 = vadd.f32 %v1589, %v1049
    %v1611 = vmax.f32 %v1610, 0.0
    %1613 = vrot.lane.b32.xlu0 %v1611, 112
    %v1614 = vpop.permute.xlu0 %1613
    %v1615 = vsel %vm160, %v1614, 0
    %1617 = vmatpush.msra.mxu0 0.0
    %1618 = vmatpush.msra.mxu0 0.0
    %1619 = vmatpush.msra.mxu0 0.0
    %1620 = vmatpush.msra.mxu0 0.0
    %1621 = vmatpush.msra.mxu0 0.0
    %1622 = vmatpush.msra.mxu0 0.0
    %1623 = vmatpush.msra.mxu0 0.0
    %1624 = vmatpush.msra.mxu0 0.0
    %1625 = vmatpush.msra.mxu0 0.0
    %1626 = vmatpush.msra.mxu0 0.0
    %1627 = vmatpush.msra.mxu0 0.0
    %1628 = vmatpush.msra.mxu0 0.0
    %1629 = vmatpush.msra.mxu0 0.0
    %1630 = vmatpush.msra.mxu0 0.0
    %1631 = vmatpush.msra.mxu0 %v54
    %1632 = vmatpush.msra.mxu0 %v53
    %1633 = vmatmul.f32.gmra.mxu0 %v1615
    %v1634 = vpop.f32.mrf.mxu0
    %v1635 = vadd.f32 %v997, %v1634
    %1636 = vdwg.mxu0
    %v1637 = vmul.f32 %v1635, %v1609
    %v1638 = vmul.f32 %v1637, %v1570
    %v1639 = vsel %vm1080, %v1638, 0.0
    %v1640 = vrot.slane %v1639, 4
    %v1641 = vadd.f32 %v1639, %v1640
    %v1642 = vrot.slane %v1641, 2
    %v1643 = vadd.f32 %v1641, %v1642
    %v1644 = vrot.slane %v1643, 1
    %v1645 = vadd.f32 %v1643, %v1644
    %v1646 = vmul.f32 %v1645, 0.25
    %v1647 = vadd.f32 %v1489, %v1646
    %v1648 = vsel %vm1080, %v1647, 0.0
    %1649 = vadd.xlane.f32.xlu0 %v1648
    %v1650 = vpop.xlane.xlu0 %1649
    %v1651 = vmul.f32 %v1650, %v1098
    %v1652 = vsub.f32 %v1647, %v1651
    %v1653 = vmul.f32 %v1652, %v1652
    %v1654 = vsel %vm1080, %v1653, 0.0
    %1655 = vadd.xlane.f32.xlu0 %v1654
    %v1656 = vpop.xlane.xlu0 %1655
    %v1657 = vmul.f32 %v1656, %v1098
    %v1658 = vadd.f32 %v1657, 1e-05
    %v1659 = vrsqrt.pop %v1658
    %v1660 = vmul.f32 %v1659, %v1658
    %v1661 = vmul.f32 %v1660, %v1659
    %v1662 = vmul.f32 0.5, %v1661
    %v1663 = vsub.f32 1.5, %v1662
    %v1664 = vmul.f32 %v1659, %v1663
    %vm1665 = vweird.f32 %v1658
    %vm1666 = vweird.f32 %v1659
    %vm1667 = vmor %vm1665, %vm1666
    %v1668 = vsel %vm1667, %v1659, %v1664
    %v1669 = vmul.f32 %v1652, %v1668
    %v1670 = vmul.f32 %v1570, %v1669
    %v1671 = vsub.f32 1.0, %v1570
    %v1672 = vmul.f32 %v1671, %v1489
    %v1673 = vadd.f32 %v1670, %v1672
    %v1675 = vsel %vm160, %v1673, 0
    %1677 = vmatpush.msra.mxu0 0.0
    %1678 = vmatpush.msra.mxu0 0.0
    %1679 = vmatpush.msra.mxu0 0.0
    %1680 = vmatpush.msra.mxu0 0.0
    %1681 = vmatpush.msra.mxu0 0.0
    %1682 = vmatpush.msra.mxu0 0.0
    %1683 = vmatpush.msra.mxu0 0.0
    %1684 = vmatpush.msra.mxu0 0.0
    %1685 = vmatpush.msra.mxu0 0.0
    %1686 = vmatpush.msra.mxu0 0.0
    %1687 = vmatpush.msra.mxu0 0.0
    %1688 = vmatpush.msra.mxu0 0.0
    %1689 = vmatpush.msra.mxu0 0.0
    %1690 = vmatpush.msra.mxu0 0.0
    %1691 = vmatpush.msra.mxu0 %v57
    %1692 = vmatpush.msra.mxu0 %v56
    %1693 = vmatmul.f32.gmra.mxu0 %v1675
    %v1694 = vpop.f32.mrf.mxu0
    %v1695 = vadd.f32 %v998, %v1694
    %1696 = vdwg.mxu0
    %v1697 = vmax.f32 %v1695, 0.0
    %v1699 = vsel %vm157, %v1697, 0
    %1701 = vmatpush.msra.mxu0 0.0
    %1702 = vmatpush.msra.mxu0 0.0
    %1703 = vmatpush.msra.mxu0 0.0
    %1704 = vmatpush.msra.mxu0 0.0
    %1705 = vmatpush.msra.mxu0 0.0
    %1706 = vmatpush.msra.mxu0 0.0
    %1707 = vmatpush.msra.mxu0 0.0
    %1708 = vmatpush.msra.mxu0 0.0
    %1709 = vmatpush.msra.mxu0 0.0
    %1710 = vmatpush.msra.mxu0 0.0
    %1711 = vmatpush.msra.mxu0 0.0
    %1712 = vmatpush.msra.mxu0 0.0
    %1713 = vmatpush.msra.mxu0 0.0
    %1714 = vmatpush.msra.mxu0 0.0
    %1715 = vmatpush.msra.mxu0 0.0
    %1716 = vmatpush.msra.mxu0 %v59
    %1717 = vmatmul.f32.gmra.mxu0 %v1699
    %v1718 = vpop.f32.mrf.mxu0
    %v1719 = vadd.f32 %v999, %v1718
    %1720 = vdwg.mxu0
    %v1721 = vxor.u32 %v1719, 2147483648
    %v1722 = vmul.f32 %v1721, 1.442695
    %v1723 = vpow.pop %v1722
    %v1724 = vadd.f32 %v1723, 1.0
    %v1725 = vrcp.pop %v1724
    %v1726 = vmul.f32 %v1724, %v1725
    %v1727 = vsub.f32 1.0, %v1726
    %v1728 = vmul.f32 %v1725, %v1727
    %v1729 = vadd.f32 %v1725, %v1728
    %vm1730 = vweird.f32 %v1724
    %vm1731 = vweird.f32 %v1725
    %vm1732 = vmor %vm1730, %vm1731
    %v1733 = vsel %vm1732, %v1725, %v1729
    %v1734 = vand.u32 2147483647, %v1724
    %vm1735 = vcmp.eq.f32.partialorder %v1734, 8.507059e+37
    %v1736 = vand.u32 %v1724, 2147483648
    %v1737 = vor.u32 1.1754944e-38, %v1736
    %v1738 = vsel %vm1735, %v1737, %v1733
    %v1739 = vmul.f32 1.0, %v1738
    %v1740 = vsub.f32 %v19, %v1739
    %v1741 = vand.u32 2147483647, %v1740
    %v1742 = vmul.f32 %v1741, %v1570
    %v1743 = vsel %vm1191, %v1742, 0.0
    %v1744 = vrot.slane %v1743, 4
    %v1745 = vadd.f32 %v1743, %v1744
    %v1746 = vrot.slane %v1745, 2
    %v1747 = vadd.f32 %v1745, %v1746
    %v1748 = vrot.slane %v1747, 1
    %v1749 = vadd.f32 %v1747, %v1748
    %v1750 = vmul.f32 %v1749, 0.25
    %v1751 = vadd.f32 %v1567, %v1750
    %vm1752 = vcmask 0
    %1753 = vst.msk [vmem:[#allocation2] sm:$0x1] %vm1752, %v1751
    // Predicated region
    $region10: #{forward.1} parent=1 // pred_check
      _
    $region11: #{forward.1} parent=1 // pred_check_branch
      %1755 = sbr.rel (0) target = $region13
    $region12: #{forward.1} parent=1 // pred_region
      %1757 = vsyncadd [#allocation3], 0
      %s1759 = sshll.u32 [#allocation2], 4
      %s1760 = int_to_ptr.vmem [resolvable:$true] %s1759
      %s1761 = sshll.u32 %s2, 4
      %s1762 = int_to_ptr.hbm [resolvable:$true] %s1761
      %1764 = dma.vmem_to_hbm [thread:$0]  %s1760, 16, %s1762, [#allocation3]
    $region13: #{forward.1} parent=1 // pred_fallthru
      _
    // Predicated region
    $region14: #{forward.1} parent=1 // pred_check
      _
    $region15: #{forward.1} parent=1 // pred_check_branch
      %1766 = sbr.rel (0) target = $region17
    $region16: #{forward.1} parent=1 // pred_region
      %1768 = dma.done [#allocation3], 16
    $region17: #{forward.1} parent=1 // pred_fallthru
      _
    %1769 = vsyncpa [#allocation3], 1

</llo_original>
